<compile_context>
chip_gen: v6e
topology: v6e:2x2x1
jax: 0.10.0
libtpu: 0.0.40
codegen_flags: <defaults>
</compile_context>

<pallas_src>
import functools
import math

import jax
import jax.numpy as jnp
from jax import lax
from jax.experimental import pallas as pl
from jax.experimental.pallas import tpu as pltpu

NBINS = 30
FFN_HIDDEN = 5
FFN_ROWS = FFN_HIDDEN + 2          # rows 0..4 = W1, row 5 = b1, row 6 = w2
NORM_EPS = 1e-12
SOFTMAX_EPS = 1e-5
_MIB = 1024 * 1024


def _pad_up(n, m):
    return -(-n // m) * m


def _per_element_vmem_bytes(qlen, dlen, e, d_chunk):
    """Rough per-batch-element VMEM footprint (bytes) incl. lane/sublane padding."""
    lane = lambda n: _pad_up(n, 128)
    sub = lambda n: _pad_up(n, 8)
    by = 4
    tiles = (sub(qlen) + sub(dlen)) * lane(e) * by * 2   # q/d input tiles, double buffered
    norms = (sub(qlen) + sub(dlen)) * lane(e) * by       # qn / dn
    inter = 2 * sub(qlen) * lane(dlen) * by              # interaction + bin index
    match = sub(qlen) * sub(NBINS) * lane(d_chunk) * by  # histogram compare chunk
    small = 16 * 8 * 128 * by                            # mask/out/h/hidden/gate slack
    return tiles + norms + inter + match + small


def _drmm_kernel(scal_ref, q_ref, qmask_ref, d_ref, ffn_ref, wg_ref, o_ref,
                 *, fold, d_chunk, mm_dtype, approx_recip):
    # scal_ref : SMEM f32[2]              = [b2, bg]
    # q_ref    : VMEM (TB, Q, E)            query tile
    # qmask_ref: VMEM (TB, Q, 1)            query mask tile
    # d_ref    : VMEM (TB, D, E)            document tile
    # ffn_ref  : VMEM (FFN_ROWS, NBINS)     rows 0..4 = W1, row 5 = b1, row 6 = w2
    # wg_ref   : VMEM (1, E)                gate weight
    # o_ref    : VMEM (TB, 1, 1)            relevance scores
    q = q_ref[...].astype(jnp.float32)
    d = d_ref[...].astype(jnp.float32)
    qmask = qmask_ref[...].astype(jnp.float32)
    tb, qlen, e = q.shape
    dlen = d.shape[1]

    # --- 1. L2-normalize along E (EUP rsqrt; eps guards all-zero / padded rows)
    qn = q * lax.rsqrt(jnp.sum(q * q, axis=-1, keepdims=True) + NORM_EPS)
    dn = d * lax.rsqrt(jnp.sum(d * d, axis=-1, keepdims=True) + NORM_EPS)
    qn = qn.astype(mm_dtype)
    dn = dn.astype(mm_dtype)

    # --- 2 + 3. interaction matmul (MXU) + histogram over the document axis ---
    if fold:
        # One dense (TB*Q, E) x (E, TB*D) matmul; off-block (cross-batch)
        # entries are mapped to bin -1 so they never match any histogram bin.
        qn2 = qn.reshape(tb * qlen, e)
        dn2 = dn.reshape(tb * dlen, e)
        full = lax.dot_general(qn2, dn2, (((1,), (1,)), ((), ())),
                               preferred_element_type=jnp.float32)        # (TB*Q, TB*D)
        idx = jnp.clip(jnp.floor((full + 1.0) * (NBINS * 0.5)),
                       0.0, float(NBINS - 1))
        ri = lax.broadcasted_iota(jnp.int32, full.shape, 0)
        ci = lax.broadcasted_iota(jnp.int32, full.shape, 1)
        valid = None
        for b in range(tb):                                               # tb is small here
            blk = ((ri >= b * qlen) & (ri < (b + 1) * qlen) &
                   (ci >= b * dlen) & (ci < (b + 1) * dlen))
            valid = blk if valid is None else (valid | blk)
        idx = jnp.where(valid, idx, -1.0)
        bins = lax.broadcasted_iota(jnp.int32, (NBINS, tb * dlen), 0).astype(jnp.float32)
        match = jnp.where(idx[:, None, :] == bins[None, :, :], 1.0, 0.0)  # (TB*Q, NBINS, TB*D)
        h = jnp.sum(match, axis=-1).reshape(tb, qlen, NBINS)
    else:
        inter = jnp.einsum("bqe,bde->bqd", qn, dn,
                           preferred_element_type=jnp.float32)            # (TB, Q, D)
        idx = jnp.clip(jnp.floor((inter + 1.0) * (NBINS * 0.5)),
                       0.0, float(NBINS - 1))
        # D-chunked histogram: the live compare intermediate is capped at
        # (TB, Q, NBINS, d_chunk) instead of (TB, Q, NBINS, D).
        dc = min(d_chunk, dlen)
        bins = lax.broadcasted_iota(jnp.int32, (NBINS, dc), 0).astype(jnp.float32)
        h = jnp.zeros((tb, qlen, NBINS), jnp.float32)
        for c0 in range(0, dlen, dc):
            cw = min(dc, dlen - c0)
            b_c = bins if cw == dc else bins[:, :cw]
            chunk = idx[:, :, c0:c0 + cw]
            match = jnp.where(chunk[:, :, None, :] == b_c[None, None, :, :], 1.0, 0.0)
            h = h + jnp.sum(match, axis=-1)
    h = jnp.log(h + 1.0)                                                  # log1p of counts

    # --- 4. tiny FFN (Linear(30,5) -> tanh -> Linear(5,1) -> tanh) on VPU/EUP:
    #        one broadcast-multiply + one lane reduce per layer.
    ffn = ffn_ref[...]
    w1 = ffn[:FFN_HIDDEN, :]                                              # (5, NBINS)
    b1 = ffn[FFN_HIDDEN:FFN_HIDDEN + 1, :FFN_HIDDEN]                      # (1, 5)
    w2 = ffn[FFN_HIDDEN + 1:FFN_HIDDEN + 2, :FFN_HIDDEN]                  # (1, 5)
    hidden = jnp.tanh(jnp.sum(h[:, :, None, :] * w1[None, None, :, :], axis=-1)
                      + b1[None])                                         # (TB, Q, 5)
    z = jnp.tanh(jnp.sum(hidden * w2[None], axis=-1, keepdims=True)
                 + scal_ref[0])                                           # (TB, Q, 1)

    # --- 5. gate Linear(E,1) over the *raw* query + masked softmax over Q.
    #        Max-stabilized; eps rescaled by exp(-m) so the formula matches the
    #        PyTorch masked_softmax exactly.
    glin = jnp.sum(q * wg_ref[...][None], axis=-1, keepdims=True) + scal_ref[1]
    m = jnp.max(glin, axis=1, keepdims=True)                              # (TB, 1, 1)
    exps = jnp.exp(glin - m) * qmask
    denom = jnp.sum(exps, axis=1, keepdims=True) + SOFTMAX_EPS * jnp.exp(-m)
    if approx_recip:
        g = exps * pl.reciprocal(denom, approx=True)
    else:
        g = exps / denom

    # --- 6. relevance scores, one per batch element in this block -------------
    o_ref[...] = jnp.sum(z * g, axis=1, keepdims=True)                    # (TB, 1, 1)


def drmm_forward(query, query_mask, document, document_mask, q_idf, params, *,
                 block_b=64, d_chunk=256, matmul_dtype=jnp.float32,
                 approx_reciprocal=False, vmem_budget_bytes=20 * _MIB):
    """Pallas DRMM forward. Returns (B,) relevance scores.

    The actual batch tile is min(block_b, VMEM-derived cap, cdiv(B, 2)) so that
    (a) the per-step working set fits the budget and (b) the "parallel" batch
    axis has >= 2 steps, engaging both v7x TensorCores.  On v6e/v7x pass
    matmul_dtype=jnp.bfloat16 to halve q/d DMA bytes and double MXU rate (all
    VPU/EUP math stays f32, which also keeps v5e happy).
    """
    del document_mask, q_idf  # unused in the reference forward (see TODOs above)
    B, Q, E = query.shape
    D = document.shape[1]
    w1, b1, w2, b2, wg, bg = params

    dc = max(1, min(d_chunk, D))
    per_elem = _per_element_vmem_bytes(Q, D, E, dc)
    tb_cap = max(1, vmem_budget_bytes // per_elem)
    tb = int(max(1, min(block_b, tb_cap, pl.cdiv(B, 2))))
    n_blocks = pl.cdiv(B, tb)
    b_pad = n_blocks * tb
    # Fold TB into one dense MXU matmul only while the folded N dim stays near
    # the MXU width; beyond that the TB^2 redundant work would dominate.
    fold = (tb > 1) and (tb * D <= 256)

    qf = query.astype(jnp.float32)
    df = document.astype(jnp.float32)
    qmask3 = query_mask.astype(jnp.float32)[:, :, None]
    if b_pad != B:
        pad = ((0, b_pad - B), (0, 0), (0, 0))
        qf = jnp.pad(qf, pad)
        df = jnp.pad(df, pad)
        qmask3 = jnp.pad(qmask3, pad)

    # Small params packed: one VMEM block (W1 | b1 | w2) + one SMEM vector [b2, bg].
    ffn_pack = jnp.zeros((FFN_ROWS, NBINS), jnp.float32)
    ffn_pack = ffn_pack.at[:FFN_HIDDEN, :].set(w1.astype(jnp.float32))
    ffn_pack = ffn_pack.at[FFN_HIDDEN, :FFN_HIDDEN].set(b1.reshape(-1).astype(jnp.float32))
    ffn_pack = ffn_pack.at[FFN_HIDDEN + 1, :FFN_HIDDEN].set(w2.reshape(-1).astype(jnp.float32))
    scal = jnp.concatenate([b2.reshape(-1), bg.reshape(-1)]).astype(jnp.float32)

    # Explicit scoped-VMEM limit from the tile footprint (valid on v5e/v6e/v7x).
    vmem_limit = int(min(64 * _MIB, max(32 * _MIB, 2 * tb * per_elem + 2 * _MIB)))

    kernel = functools.partial(_drmm_kernel, fold=fold, d_chunk=dc,
                               mm_dtype=matmul_dtype, approx_recip=approx_reciprocal)
    out = pl.pallas_call(
        kernel,
        out_shape=jax.ShapeDtypeStruct((b_pad, 1, 1), jnp.float32),
        grid_spec=pltpu.PrefetchScalarGridSpec(
            num_scalar_prefetch=1,
            grid=(n_blocks,),
            in_specs=[
                pl.BlockSpec((tb, Q, E), lambda b, s: (b, 0, 0)),        # query
                pl.BlockSpec((tb, Q, 1), lambda b, s: (b, 0, 0)),        # query mask
                pl.BlockSpec((tb, D, E), lambda b, s: (b, 0, 0)),        # document
                pl.BlockSpec((FFN_ROWS, NBINS), lambda b, s: (0, 0)),    # W1 | b1 | w2
                pl.BlockSpec((1, E), lambda b, s: (0, 0)),               # gate weight
            ],
            out_specs=pl.BlockSpec((tb, 1, 1), lambda b, s: (b, 0, 0)),
        ),
        compiler_params=pltpu.CompilerParams(
            dimension_semantics=("parallel",),   # batch blocks are independent
            vmem_limit_bytes=vmem_limit),
    )(scal, qf, qmask3, df, ffn_pack, wg.astype(jnp.float32))
    return out[:B, 0, 0]


def drmm_reference(query, query_mask, document, params):
    """Pure-JAX reference mirroring the PyTorch forward (unstabilized softmax)."""
    w1, b1, w2, b2, wg, bg = params
    qn = query * lax.rsqrt(jnp.sum(query * query, axis=2, keepdims=True) + NORM_EPS)
    dn = document * lax.rsqrt(jnp.sum(document * document, axis=2, keepdims=True) + NORM_EPS)
    inter = jnp.einsum('bqe,bde->bqd', qn, dn)
    idx = jnp.clip(jnp.floor((inter + 1.0) * (NBINS * 0.5)),
                   0, NBINS - 1).astype(jnp.int32)
    h = jnp.sum(jax.nn.one_hot(idx, NBINS, dtype=jnp.float32), axis=2)
    h = jnp.log1p(h)
    hidden = jnp.tanh(h @ w1.T + b1)
    z = jnp.tanh(hidden @ w2.T + b2)[..., 0]
    g = (query @ wg.T + bg)[..., 0]
    exps = jnp.exp(g) * query_mask.astype(jnp.float32)
    g = exps / (jnp.sum(exps, axis=1, keepdims=True) + SOFTMAX_EPS)
    return jnp.sum(z * g, axis=1)


def _uniform_init(key, shape, fan_in):
    bound = 1.0 / math.sqrt(fan_in)
    return jax.random.uniform(key, shape, jnp.float32, -bound, bound)


if __name__ == "__main__":
    Q, E = 8, 32

    key = jax.random.PRNGKey(0)
    k_q, k_d, k_idf, k_w1, k_b1, k_w2, k_b2, k_wg, k_bg = jax.random.split(key, 9)

    # nn.Linear-style deterministic init: weight (out, in), bias (out,)
    params = (
        _uniform_init(k_w1, (FFN_HIDDEN, NBINS), NBINS),      # ffn[0].weight
        _uniform_init(k_b1, (FFN_HIDDEN,), NBINS),            # ffn[0].bias
        _uniform_init(k_w2, (1, FFN_HIDDEN), FFN_HIDDEN),     # ffn[2].weight
        _uniform_init(k_b2, (1,), FFN_HIDDEN),                # ffn[2].bias
        _uniform_init(k_wg, (1, E), E),                       # gate.weight
        _uniform_init(k_bg, (1,), E),                         # gate.bias
    )

    # Config 1: B=2, D=16 -> tb=1, two "parallel" grid steps (both v7x TCs),
    # batched-einsum interaction, single-chunk histogram.
    B, D = 2, 16
    query = jax.random.normal(k_q, (B, Q, E), jnp.float32)
    document = jax.random.normal(k_d, (B, D, E), jnp.float32)
    query_mask = jnp.array([[1, 1, 1, 1, 1, 1, 0, 0],
                            [1, 1, 1, 1, 1, 1, 1, 1]], dtype=jnp.float32)
    document_mask = jnp.ones((B, D), jnp.float32)             # unused by forward
    q_idf = jax.random.uniform(k_idf, (B, Q), jnp.float32)    # unused (mode != 'idf')

    scores = jax.block_until_ready(
        drmm_forward(query, query_mask, document, document_mask, q_idf, params))
    ref = jax.block_until_ready(drmm_reference(query, query_mask, document, params))
    assert scores.shape == (B,)
    assert jnp.allclose(scores, ref, atol=1e-3, rtol=5e-3), (scores, ref)

    # Config 2: odd batch + block_b=2 -> tb=2, batch padding, folded
    # (TB*Q, E) x (E, TB*D) single-matmul interaction path.
    B2, D2 = 3, 16
    k_q2, k_d2 = jax.random.split(jax.random.PRNGKey(1), 2)
    query2 = jax.random.normal(k_q2, (B2, Q, E), jnp.float32)
    document2 = jax.random.normal(k_d2, (B2, D2, E), jnp.float32)
    qmask2 = jnp.ones((B2, Q), jnp.float32).at[0, Q - 2:].set(0.0)
    scores2 = jax.block_until_ready(
        drmm_forward(query2, qmask2, document2, jnp.ones((B2, D2), jnp.float32),
                     jnp.ones((B2, Q), jnp.float32), params, block_b=2))
    ref2 = jax.block_until_ready(drmm_reference(query2, qmask2, document2, params))
    assert scores2.shape == (B2,)
    assert jnp.allclose(scores2, ref2, atol=1e-3, rtol=5e-3), (scores2, ref2)

    # Config 3: long documents (D=320) -> tb=2 but un-folded (tb*D > 256),
    # exercising the D-chunked histogram with a ragged last chunk (256 + 64).
    B3, D3 = 4, 320
    k_q3, k_d3 = jax.random.split(jax.random.PRNGKey(2), 2)
    query3 = jax.random.normal(k_q3, (B3, Q, E), jnp.float32)
    document3 = jax.random.normal(k_d3, (B3, D3, E), jnp.float32)
    qmask3_ = jnp.ones((B3, Q), jnp.float32).at[2, Q - 3:].set(0.0)
    scores3 = jax.block_until_ready(
        drmm_forward(query3, qmask3_, document3, jnp.ones((B3, D3), jnp.float32),
                     jnp.ones((B3, Q), jnp.float32), params, block_b=4))
    ref3 = jax.block_until_ready(drmm_reference(query3, qmask3_, document3, params))
    assert scores3.shape == (B3,)
    assert jnp.allclose(scores3, ref3, atol=1e-3, rtol=5e-3), (scores3, ref3)

    print("KERNEL_OK")
</pallas_src>

<mosaic_0001>
module attributes {stable_mosaic.version = 11 : i64} {
  func.func @_drmm_kernel(%arg0: i32, %arg1: memref<2xf32, #tpu.memory_space<smem>>, %arg2: memref<1x8x32xf32, #tpu.memory_space<vmem>>, %arg3: memref<1x8x1xf32, #tpu.memory_space<vmem>>, %arg4: memref<1x16x32xf32, #tpu.memory_space<vmem>>, %arg5: memref<7x30xf32, #tpu.memory_space<vmem>>, %arg6: memref<1x32xf32, #tpu.memory_space<vmem>>, %arg7: memref<1x1x1xf32, #tpu.memory_space<vmem>>) attributes {dimension_semantics = [#tpu.dimension_semantics<parallel>], iteration_bounds = array<i64: 2>, scalar_prefetch = 1 : i64, scratch_operands = 0 : i64, tpu.core_type = #tpu.core_type<tc>, window_params = [{transform_indices = @transform_0, window_bounds = array<i64: 1, 8, 32>}, {transform_indices = @transform_1, window_bounds = array<i64: 1, 8, 1>}, {transform_indices = @transform_2, window_bounds = array<i64: 1, 16, 32>}, {pipeline_mode = #tpu.pipeline_mode<synchronous>, transform_indices = @transform_3, window_bounds = array<i64: 7, 30>}, {pipeline_mode = #tpu.pipeline_mode<synchronous>, transform_indices = @transform_4, window_bounds = array<i64: 1, 32>}, {transform_indices = @transform_5, window_bounds = array<i64: 1, 1, 1>}]} {
    %c0 = arith.constant 0 : index
    %c0_0 = arith.constant 0 : index
    %c0_1 = arith.constant 0 : index
    %0 = vector.load %arg2[%c0, %c0_0, %c0_1] : memref<1x8x32xf32, #tpu.memory_space<vmem>>, vector<1x8x32xf32>
    %c0_2 = arith.constant 0 : index
    %c0_3 = arith.constant 0 : index
    %c0_4 = arith.constant 0 : index
    %1 = vector.load %arg4[%c0_2, %c0_3, %c0_4] : memref<1x16x32xf32, #tpu.memory_space<vmem>>, vector<1x16x32xf32>
    %c0_5 = arith.constant 0 : index
    %c0_6 = arith.constant 0 : index
    %c0_7 = arith.constant 0 : index
    %2 = vector.load %arg3[%c0_5, %c0_6, %c0_7] : memref<1x8x1xf32, #tpu.memory_space<vmem>>, vector<1x8x1xf32>
    %3 = arith.mulf %0, %0 : vector<1x8x32xf32>
    %cst = arith.constant dense<0.000000e+00> : vector<1x8xf32>
    %4 = vector.multi_reduction <add>, %3, %cst [2] : vector<1x8x32xf32> to vector<1x8xf32>
    %5 = vector.shape_cast %4 : vector<1x8xf32> to vector<1x8x1xf32>
    %cst_8 = arith.constant 9.99999996E-13 : f32
    %6 = vector.broadcast %cst_8 : f32 to vector<1x8x1xf32>
    %7 = arith.addf %5, %6 : vector<1x8x1xf32>
    %8 = math.rsqrt %7 : vector<1x8x1xf32>
    %9 = vector.broadcast %8 : vector<1x8x1xf32> to vector<1x8x32xf32>
    %10 = arith.mulf %0, %9 : vector<1x8x32xf32>
    %11 = arith.mulf %1, %1 : vector<1x16x32xf32>
    %cst_9 = arith.constant dense<0.000000e+00> : vector<1x16xf32>
    %12 = vector.multi_reduction <add>, %11, %cst_9 [2] : vector<1x16x32xf32> to vector<1x16xf32>
    %13 = vector.shape_cast %12 : vector<1x16xf32> to vector<1x16x1xf32>
    %cst_10 = arith.constant 9.99999996E-13 : f32
    %14 = vector.broadcast %cst_10 : f32 to vector<1x16x1xf32>
    %15 = arith.addf %13, %14 : vector<1x16x1xf32>
    %16 = math.rsqrt %15 : vector<1x16x1xf32>
    %17 = vector.broadcast %16 : vector<1x16x1xf32> to vector<1x16x32xf32>
    %18 = arith.mulf %1, %17 : vector<1x16x32xf32>
    "tpu.trace_start"() <{level = 10 : i32, message = "bqe,bde->bqd"}> : () -> ()
    %cst_11 = arith.constant dense<0.000000e+00> : vector<1x8x16xf32>
    %19 = tpu.matmul %10, %18, %cst_11 {dimension_numbers = #tpu.dot_dimension_numbers<[2], [2], [1], [1], [0, 0, 0, 1, 1, 1], [0], [0]>} : vector<1x8x32xf32>, vector<1x16x32xf32>, vector<1x8x16xf32> -> vector<1x8x16xf32>
    "tpu.trace_stop"() : () -> ()
    %cst_12 = arith.constant 1.000000e+00 : f32
    %20 = vector.broadcast %cst_12 : f32 to vector<1x8x16xf32>
    %21 = arith.addf %19, %20 : vector<1x8x16xf32>
    %cst_13 = arith.constant 1.500000e+01 : f32
    %22 = vector.broadcast %cst_13 : f32 to vector<1x8x16xf32>
    %23 = arith.mulf %21, %22 : vector<1x8x16xf32>
    %24 = math.floor %23 : vector<1x8x16xf32>
    %cst_14 = arith.constant 0.000000e+00 : f32
    %cst_15 = arith.constant 2.900000e+01 : f32
    %25 = vector.broadcast %cst_14 : f32 to vector<1x8x16xf32>
    %26 = arith.maximumf %25, %24 : vector<1x8x16xf32>
    %27 = vector.broadcast %cst_15 : f32 to vector<1x8x16xf32>
    %28 = arith.minimumf %27, %26 : vector<1x8x16xf32>
    %29 = tpu.iota {dimensions = array<i32: 0>} : vector<30x16xi32>
    %30 = arith.sitofp %29 : vector<30x16xi32> to vector<30x16xf32>
    %cst_16 = arith.constant 0.000000e+00 : f32
    %31 = vector.broadcast %cst_16 : f32 to vector<1x8x30xf32>
    %32 = vector.shape_cast %28 : vector<1x8x16xf32> to vector<1x8x1x16xf32>
    %33 = vector.shape_cast %30 : vector<30x16xf32> to vector<1x1x30x16xf32>
    %34 = vector.broadcast %32 : vector<1x8x1x16xf32> to vector<1x8x30x16xf32>
    %35 = vector.broadcast %33 : vector<1x1x30x16xf32> to vector<1x8x30x16xf32>
    %36 = arith.cmpf oeq, %34, %35 : vector<1x8x30x16xf32>
    %cst_17 = arith.constant 1.000000e+00 : f32
    %cst_18 = arith.constant 0.000000e+00 : f32
    %37 = vector.broadcast %cst_17 : f32 to vector<1x8x30x16xf32>
    %38 = vector.broadcast %cst_18 : f32 to vector<1x8x30x16xf32>
    %39 = arith.select %36, %37, %38 : vector<1x8x30x16xi1>, vector<1x8x30x16xf32>
    %cst_19 = arith.constant dense<0.000000e+00> : vector<1x8x30xf32>
    %40 = vector.multi_reduction <add>, %39, %cst_19 [3] : vector<1x8x30x16xf32> to vector<1x8x30xf32>
    %41 = arith.addf %31, %40 : vector<1x8x30xf32>
    %cst_20 = arith.constant 1.000000e+00 : f32
    %42 = vector.broadcast %cst_20 : f32 to vector<1x8x30xf32>
    %43 = arith.addf %41, %42 : vector<1x8x30xf32>
    %44 = math.log %43 : vector<1x8x30xf32>
    %c0_21 = arith.constant 0 : index
    %c0_22 = arith.constant 0 : index
    %45 = vector.load %arg5[%c0_21, %c0_22] : memref<7x30xf32, #tpu.memory_space<vmem>>, vector<7x30xf32>
    %46 = vector.extract_strided_slice %45 {offsets = [0, 0], sizes = [5, 30], strides = [1, 1]} : vector<7x30xf32> to vector<5x30xf32>
    %47 = vector.extract_strided_slice %45 {offsets = [5, 0], sizes = [1, 5], strides = [1, 1]} : vector<7x30xf32> to vector<1x5xf32>
    %48 = vector.extract_strided_slice %45 {offsets = [6, 0], sizes = [1, 5], strides = [1, 1]} : vector<7x30xf32> to vector<1x5xf32>
    %49 = vector.shape_cast %44 : vector<1x8x30xf32> to vector<1x8x1x30xf32>
    %50 = vector.shape_cast %46 : vector<5x30xf32> to vector<1x1x5x30xf32>
    %51 = vector.broadcast %49 : vector<1x8x1x30xf32> to vector<1x8x5x30xf32>
    %52 = vector.broadcast %50 : vector<1x1x5x30xf32> to vector<1x8x5x30xf32>
    %53 = arith.mulf %51, %52 : vector<1x8x5x30xf32>
    %cst_23 = arith.constant dense<0.000000e+00> : vector<1x8x5xf32>
    %54 = vector.multi_reduction <add>, %53, %cst_23 [3] : vector<1x8x5x30xf32> to vector<1x8x5xf32>
    %55 = vector.shape_cast %47 : vector<1x5xf32> to vector<1x1x5xf32>
    %56 = vector.broadcast %55 : vector<1x1x5xf32> to vector<1x8x5xf32>
    %57 = arith.addf %54, %56 : vector<1x8x5xf32>
    %58 = math.tanh %57 : vector<1x8x5xf32>
    %59 = vector.shape_cast %48 : vector<1x5xf32> to vector<1x1x5xf32>
    %60 = vector.broadcast %59 : vector<1x1x5xf32> to vector<1x8x5xf32>
    %61 = arith.mulf %58, %60 : vector<1x8x5xf32>
    %cst_24 = arith.constant dense<0.000000e+00> : vector<1x8xf32>
    %62 = vector.multi_reduction <add>, %61, %cst_24 [2] : vector<1x8x5xf32> to vector<1x8xf32>
    %63 = vector.shape_cast %62 : vector<1x8xf32> to vector<1x8x1xf32>
    %c0_25 = arith.constant 0 : index
    %64 = memref.load %arg1[%c0_25] : memref<2xf32, #tpu.memory_space<smem>>
    %65 = vector.broadcast %64 : f32 to vector<1x8x1xf32>
    %66 = arith.addf %63, %65 : vector<1x8x1xf32>
    %67 = math.tanh %66 : vector<1x8x1xf32>
    %c0_26 = arith.constant 0 : index
    %c0_27 = arith.constant 0 : index
    %68 = vector.load %arg6[%c0_26, %c0_27] : memref<1x32xf32, #tpu.memory_space<vmem>>, vector<1x32xf32>
    %69 = vector.shape_cast %68 : vector<1x32xf32> to vector<1x1x32xf32>
    %70 = vector.broadcast %69 : vector<1x1x32xf32> to vector<1x8x32xf32>
    %71 = arith.mulf %0, %70 : vector<1x8x32xf32>
    %cst_28 = arith.constant dense<0.000000e+00> : vector<1x8xf32>
    %72 = vector.multi_reduction <add>, %71, %cst_28 [2] : vector<1x8x32xf32> to vector<1x8xf32>
    %73 = vector.shape_cast %72 : vector<1x8xf32> to vector<1x8x1xf32>
    %c1 = arith.constant 1 : index
    %74 = memref.load %arg1[%c1] : memref<2xf32, #tpu.memory_space<smem>>
    %75 = vector.broadcast %74 : f32 to vector<1x8x1xf32>
    %76 = arith.addf %73, %75 : vector<1x8x1xf32>
    %cst_29 = arith.constant dense<0xFF800000> : vector<1x1xf32>
    %77 = vector.multi_reduction <maximumf>, %76, %cst_29 [1] : vector<1x8x1xf32> to vector<1x1xf32>
    %78 = vector.shape_cast %77 : vector<1x1xf32> to vector<1x1x1xf32>
    %79 = vector.broadcast %78 : vector<1x1x1xf32> to vector<1x8x1xf32>
    %80 = arith.subf %76, %79 : vector<1x8x1xf32>
    %81 = math.exp %80 : vector<1x8x1xf32>
    %82 = arith.mulf %81, %2 : vector<1x8x1xf32>
    %cst_30 = arith.constant dense<0.000000e+00> : vector<1x1xf32>
    %83 = vector.multi_reduction <add>, %82, %cst_30 [1] : vector<1x8x1xf32> to vector<1x1xf32>
    %84 = vector.shape_cast %83 : vector<1x1xf32> to vector<1x1x1xf32>
    %cst_31 = arith.constant 0.000000e+00 : f32
    %85 = vector.broadcast %cst_31 : f32 to vector<1x1x1xf32>
    %86 = arith.subf %85, %78 : vector<1x1x1xf32>
    %87 = math.exp %86 : vector<1x1x1xf32>
    %cst_32 = arith.constant 9.99999974E-6 : f32
    %88 = vector.broadcast %cst_32 : f32 to vector<1x1x1xf32>
    %89 = arith.mulf %88, %87 : vector<1x1x1xf32>
    %90 = arith.addf %84, %89 : vector<1x1x1xf32>
    %91 = vector.broadcast %90 : vector<1x1x1xf32> to vector<1x8x1xf32>
    %92 = arith.divf %82, %91 : vector<1x8x1xf32>
    %93 = arith.mulf %67, %92 : vector<1x8x1xf32>
    %cst_33 = arith.constant dense<0.000000e+00> : vector<1x1xf32>
    %94 = vector.multi_reduction <add>, %93, %cst_33 [1] : vector<1x8x1xf32> to vector<1x1xf32>
    %95 = vector.shape_cast %94 : vector<1x1xf32> to vector<1x1x1xf32>
    %c0_34 = arith.constant 0 : index
    %c0_35 = arith.constant 0 : index
    %c0_36 = arith.constant 0 : index
    %96 = vector.load %arg7[%c0_34, %c0_35, %c0_36] : memref<1x1x1xf32, #tpu.memory_space<vmem>>, vector<1x1x1xf32>
    tpu.vector_store %arg7[%c0_34, %c0_35, %c0_36], %95 {strides = array<i32>} : memref<1x1x1xf32, #tpu.memory_space<vmem>>, vector<1x1x1xf32>,
    return
  }
  func.func @transform_0(%arg0: i32, %arg1: memref<2xf32, #tpu.memory_space<smem>>) -> (i32, i32, i32) {
    %c0_i32 = arith.constant 0 : i32
    %c0_i32_0 = arith.constant 0 : i32
    %c0_i32_1 = arith.constant 0 : i32
    return %arg0, %c0_i32, %c0_i32_0 : i32, i32, i32
  }
  func.func @transform_1(%arg0: i32, %arg1: memref<2xf32, #tpu.memory_space<smem>>) -> (i32, i32, i32) {
    %c0_i32 = arith.constant 0 : i32
    %c0_i32_0 = arith.constant 0 : i32
    %c0_i32_1 = arith.constant 0 : i32
    return %arg0, %c0_i32, %c0_i32_0 : i32, i32, i32
  }
  func.func @transform_2(%arg0: i32, %arg1: memref<2xf32, #tpu.memory_space<smem>>) -> (i32, i32, i32) {
    %c0_i32 = arith.constant 0 : i32
    %c0_i32_0 = arith.constant 0 : i32
    %c0_i32_1 = arith.constant 0 : i32
    return %arg0, %c0_i32, %c0_i32_0 : i32, i32, i32
  }
  func.func @transform_3(%arg0: i32, %arg1: memref<2xf32, #tpu.memory_space<smem>>) -> (i32, i32) {
    %c0_i32 = arith.constant 0 : i32
    %c0_i32_0 = arith.constant 0 : i32
    %c0_i32_1 = arith.constant 0 : i32
    return %c0_i32, %c0_i32_0 : i32, i32
  }
  func.func @transform_4(%arg0: i32, %arg1: memref<2xf32, #tpu.memory_space<smem>>) -> (i32, i32) {
    %c0_i32 = arith.constant 0 : i32
    %c0_i32_0 = arith.constant 0 : i32
    %c0_i32_1 = arith.constant 0 : i32
    return %c0_i32, %c0_i32_0 : i32, i32
  }
  func.func @transform_5(%arg0: i32, %arg1: memref<2xf32, #tpu.memory_space<smem>>) -> (i32, i32, i32) {
    %c0_i32 = arith.constant 0 : i32
    %c0_i32_0 = arith.constant 0 : i32
    %c0_i32_1 = arith.constant 0 : i32
    return %arg0, %c0_i32, %c0_i32_0 : i32, i32, i32
  }
}

</mosaic_0001>

<llo_original>
// kernel: tpu_custom_call.1
$region0: #{tpu_custom_call.1}
  #allocation0 [shape = 'u32[]', space=smem, size = 0x4, offset = 0x4, fixed_abs, tag = 'smem constant byte address 0x4 - core index']
  #allocation1 [shape = 'u32[144,128]{1,0:T(1,128)}', space=vmem, size = 0x12000, scoped, tag = 'internal scratch']
  #allocation2 [shape = 's32[1]{0}', space=sflag, size = 0x4, scoped, tag = 'scoped memory for tpu_custom_call.1']
  #allocation3 [shape = 'u8[512]{0}', space=smem, size = 0x200, scoped, tag = 'prefetched SMEM operand 0']
  %s0 = inlined_call_operand.vmem [shape: f32[2], index: 0, kind: input, shape index: {}]
  %s1 = inlined_call_operand.vmem [shape: f32[2,8,32], index: 1, kind: input, shape index: {}]
  %s2 = inlined_call_operand.vmem [shape: f32[2,8,1], index: 2, kind: input, shape index: {}]
  %s3 = inlined_call_operand.hbm [shape: f32[2,16,32], index: 3, kind: input, shape index: {}]
  %s4 = inlined_call_operand.vmem [shape: f32[7,30], index: 4, kind: input, shape index: {}]
  %s5 = inlined_call_operand.vmem [shape: f32[1,32], index: 5, kind: input, shape index: {}]
  %s6 = inlined_call_operand.vmem [shape: f32[2,1,1], index: 6, kind: output, shape index: {}]
  %s7 = sld [smem:[#allocation0]]
  $region57: #{tpu_custom_call.1} parent=0
    _
  %s9 = ssub.s32 1, %s7
  %s10 = scalar_select 0, %s9, %s7
  %s11 = sshll.u32 %s0, 4
  %s12 = int_to_ptr.vmem [resolvable:$true] %s11
  %14 = dma.vmem_to_smem %s12, 16, [#allocation3], [#allocation2]
  %15 = dma.done [#allocation2], 16
  %16 = sfence
  $region1: #{tpu_custom_call.1} parent=0
    #allocation4 [shape = 'u8[16384]{0}', space=vmem, size = 0x4000, scoped, tag = 'input window, operand 3']
    #allocation5 [shape = 's32[2]{0}', space=sflag, size = 0x8, scoped, tag = 'scoped memory for tpu_custom_call.1']
    %17 = vsyncpa [#allocation5], 0
    %s18 = scalar_lea.sflag [#allocation5], 1
    %19 = vsyncpa %s18, 0
    loop: start=0, step=1, limit=4
    $region2: #{tpu_custom_call.1} parent=1 // loop_pre_header
      _
    $region3: #{tpu_custom_call.1} parent=1 // loop_header
      %s21 = sphi 0, %s25
      %p22 = scmp.ge.s32.totalorder %s21, 4
      %s31 = sphi 0, %s33
      %s34 = sphi 0, %s31
      %s35 = sphi 0, %s34
      %s51 = sphi 0, %s35
      %s57 = sphi 0, %s59
      %s60 = sphi 0, %s57
      %s61 = sphi 0, %s60
      %s77 = sphi 0, %s61
      %s83 = sphi 0, %s85
      %s86 = sphi 0, %s83
      %s87 = sphi 0, %s86
      %s103 = sphi 0, %s87
      %s107 = sphi 0, %s107
      %s109 = sphi 0, %s107
      %s110 = sphi 0, %s109
      %s124 = sphi 0, %s110
      %s128 = sphi 0, %s128
      %s130 = sphi 0, %s128
      %s131 = sphi 0, %s130
      %s145 = sphi 0, %s131
      %s151 = sphi 0, %s153
      %s154 = sphi 0, %s151
      %s155 = sphi 0, %s154
      %s171 = sphi 0, %s155
    $region4: #{tpu_custom_call.1} parent=1 // loop_header_branch
      %24 = sbr.rel (%p22) target = $region8
    $region5: #{tpu_custom_call.1} parent=1 // loop_body
      %s26 = ssub.s32 %s21, 1
      %s27 = ssub.s32 %s21, 2
      %s28 = sadd.s32 %s21, 1
      %s29 = ssub.s32 %s21, %s28
      %p30 = scmp.eq.s32.totalorder %s29, 0
      %s32 = sadd.s32 %s31, 1
      %s33 = scalar_select %p30, %s31, %s32
      %p36 = pneg %p30
      %p37 = scmp.eq.s32.totalorder %s21, 1
      %p38 = por %p36, %p37
      %p39 = scmp.ne.s32.totalorder %s31, %s34
      %p40 = scmp.eq.s32.totalorder %s21, 0
      %p41 = por %p39, %p40
      %p42 = scmp.ne.s32.totalorder %s31, %s34
      %p43 = scmp.eq.s32.totalorder %s26, 1
      %p44 = por %p42, %p43
      %p45 = scmp.ne.s32.totalorder %s34, %s35
      %p46 = scmp.eq.s32.totalorder %s26, 0
      %p47 = por %p45, %p46
      %p48 = scmp.ne.s32.totalorder %s34, %s35
      %p49 = scmp.eq.s32.totalorder %s27, 1
      %p50 = por %p48, %p49
      %p52 = scmp.ne.s32.totalorder %s35, %s51
      %p53 = scmp.eq.s32.totalorder %s27, 0
      %p54 = por %p52, %p53
      %s55 = ssub.s32 %s21, %s28
      %p56 = scmp.eq.s32.totalorder %s55, 0
      %s58 = sadd.s32 %s57, 1
      %s59 = scalar_select %p56, %s57, %s58
      %p62 = pneg %p56
      %p63 = scmp.eq.s32.totalorder %s21, 1
      %p64 = por %p62, %p63
      %p65 = scmp.ne.s32.totalorder %s57, %s60
      %p66 = scmp.eq.s32.totalorder %s21, 0
      %p67 = por %p65, %p66
      %p68 = scmp.ne.s32.totalorder %s57, %s60
      %p69 = scmp.eq.s32.totalorder %s26, 1
      %p70 = por %p68, %p69
      %p71 = scmp.ne.s32.totalorder %s60, %s61
      %p72 = scmp.eq.s32.totalorder %s26, 0
      %p73 = por %p71, %p72
      %p74 = scmp.ne.s32.totalorder %s60, %s61
      %p75 = scmp.eq.s32.totalorder %s27, 1
      %p76 = por %p74, %p75
      %p78 = scmp.ne.s32.totalorder %s61, %s77
      %p79 = scmp.eq.s32.totalorder %s27, 0
      %p80 = por %p78, %p79
      %s81 = ssub.s32 %s21, %s28
      %p82 = scmp.eq.s32.totalorder %s81, 0
      %s84 = sadd.s32 %s83, 1
      %s85 = scalar_select %p82, %s83, %s84
      %p88 = pneg %p82
      %p89 = scmp.eq.s32.totalorder %s21, 1
      %p90 = por %p88, %p89
      %p91 = scmp.ne.s32.totalorder %s83, %s86
      %p92 = scmp.eq.s32.totalorder %s21, 0
      %p93 = por %p91, %p92
      %p94 = scmp.ne.s32.totalorder %s83, %s86
      %p95 = scmp.eq.s32.totalorder %s26, 1
      %p96 = por %p94, %p95
      %p97 = scmp.ne.s32.totalorder %s86, %s87
      %p98 = scmp.eq.s32.totalorder %s26, 0
      %p99 = por %p97, %p98
      %p100 = scmp.ne.s32.totalorder %s86, %s87
      %p101 = scmp.eq.s32.totalorder %s27, 1
      %p102 = por %p100, %p101
      %p104 = scmp.ne.s32.totalorder %s87, %s103
      %p105 = scmp.eq.s32.totalorder %s27, 0
      %p106 = por %p104, %p105
      %s108 = sadd.s32 %s107, 1
      %p111 = scmp.eq.s32.totalorder %s21, 1
      %p112 = scmp.ne.s32.totalorder %s107, %s109
      %p113 = scmp.eq.s32.totalorder %s21, 0
      %p114 = por %p112, %p113
      %p115 = scmp.ne.s32.totalorder %s107, %s109
      %p116 = scmp.eq.s32.totalorder %s26, 1
      %p117 = por %p115, %p116
      %p118 = scmp.ne.s32.totalorder %s109, %s110
      %p119 = scmp.eq.s32.totalorder %s26, 0
      %p120 = por %p118, %p119
      %p121 = scmp.ne.s32.totalorder %s109, %s110
      %p122 = scmp.eq.s32.totalorder %s27, 1
      %p123 = por %p121, %p122
      %p125 = scmp.ne.s32.totalorder %s110, %s124
      %p126 = scmp.eq.s32.totalorder %s27, 0
      %p127 = por %p125, %p126
      %s129 = sadd.s32 %s128, 1
      %p132 = scmp.eq.s32.totalorder %s21, 1
      %p133 = scmp.ne.s32.totalorder %s128, %s130
      %p134 = scmp.eq.s32.totalorder %s21, 0
      %p135 = por %p133, %p134
      %p136 = scmp.ne.s32.totalorder %s128, %s130
      %p137 = scmp.eq.s32.totalorder %s26, 1
      %p138 = por %p136, %p137
      %p139 = scmp.ne.s32.totalorder %s130, %s131
      %p140 = scmp.eq.s32.totalorder %s26, 0
      %p141 = por %p139, %p140
      %p142 = scmp.ne.s32.totalorder %s130, %s131
      %p143 = scmp.eq.s32.totalorder %s27, 1
      %p144 = por %p142, %p143
      %p146 = scmp.ne.s32.totalorder %s131, %s145
      %p147 = scmp.eq.s32.totalorder %s27, 0
      %p148 = por %p146, %p147
      %s149 = ssub.s32 %s21, %s28
      %p150 = scmp.eq.s32.totalorder %s149, 0
      %s152 = sadd.s32 %s151, 1
      %s153 = scalar_select %p150, %s151, %s152
      %p156 = pneg %p150
      %p157 = scmp.eq.s32.totalorder %s21, 1
      %p158 = por %p156, %p157
      %p159 = scmp.ne.s32.totalorder %s151, %s154
      %p160 = scmp.eq.s32.totalorder %s21, 0
      %p161 = por %p159, %p160
      %p162 = scmp.ne.s32.totalorder %s151, %s154
      %p163 = scmp.eq.s32.totalorder %s26, 1
      %p164 = por %p162, %p163
      %p165 = scmp.ne.s32.totalorder %s154, %s155
      %p166 = scmp.eq.s32.totalorder %s26, 0
      %p167 = por %p165, %p166
      %p168 = scmp.ne.s32.totalorder %s154, %s155
      %p169 = scmp.eq.s32.totalorder %s27, 1
      %p170 = por %p168, %p169
      %p172 = scmp.ne.s32.totalorder %s155, %s171
      %p173 = scmp.eq.s32.totalorder %s27, 0
      %p174 = por %p172, %p173
      %p175 = scmp.le.s32.totalorder 1, %s21
      %p176 = scmp.lt.s32.totalorder %s21, 3
      %p177 = pnand %p175, %p176
      %p178 = pneg %p177
      // Predicated region
      $region9: #{tpu_custom_call.1} parent=5 // pred_check
        _
      $region10: #{tpu_custom_call.1} parent=5 // pred_check_branch
        %180 = sbr.rel (%p177) target = $region12
      $region11: #{tpu_custom_call.1} parent=5 // pred_region
        %s181 = ssub.s32 %s21, 1
        // Predicated region
        $region13: #{tpu_custom_call.1} parent=11 // pred_check
          %p182 = pneg %p120
        $region14: #{tpu_custom_call.1} parent=11 // pred_check_branch
          %184 = sbr.rel (%p182) target = $region16
        $region15: #{tpu_custom_call.1} parent=11 // pred_region
          _
        $region16: #{tpu_custom_call.1} parent=11 // pred_fallthru
          _
        // Predicated region
        $region17: #{tpu_custom_call.1} parent=11 // pred_check
          %p185 = pneg %p141
        $region18: #{tpu_custom_call.1} parent=11 // pred_check_branch
          %187 = sbr.rel (%p185) target = $region20
        $region19: #{tpu_custom_call.1} parent=11 // pred_region
          _
        $region20: #{tpu_custom_call.1} parent=11 // pred_fallthru
          _
      $region12: #{tpu_custom_call.1} parent=5 // pred_fallthru
        _
      %p188 = scmp.lt.s32.totalorder %s21, 2
      // Predicated region
      $region21: #{tpu_custom_call.1} parent=5 // pred_check
        %p189 = pneg %p188
      $region22: #{tpu_custom_call.1} parent=5 // pred_check_branch
        %191 = sbr.rel (%p189) target = $region24
      $region23: #{tpu_custom_call.1} parent=5 // pred_region
        // Predicated region
        $region25: #{tpu_custom_call.1} parent=23 // pred_check
          %p192 = pneg %p41
        $region26: #{tpu_custom_call.1} parent=23 // pred_check_branch
          %194 = sbr.rel (%p192) target = $region28
        $region27: #{tpu_custom_call.1} parent=23 // pred_region
          %p195 = scmp.lt.s32.totalorder %s21, 1
          %s196 = scalar_select %p195, %s21, 1
          %s197 = smul.addr %s196, 8
          %s198 = scalar_lea.vmem %s1, %s197
        $region28: #{tpu_custom_call.1} parent=23 // pred_fallthru
          _
        // Predicated region
        $region29: #{tpu_custom_call.1} parent=23 // pred_check
          %p199 = pneg %p67
        $region30: #{tpu_custom_call.1} parent=23 // pred_check_branch
          %201 = sbr.rel (%p199) target = $region32
        $region31: #{tpu_custom_call.1} parent=23 // pred_region
          %p202 = scmp.lt.s32.totalorder %s21, 1
          %s203 = scalar_select %p202, %s21, 1
          %s204 = smul.addr %s203, 8
          %s205 = scalar_lea.vmem %s2, %s204
        $region32: #{tpu_custom_call.1} parent=23 // pred_fallthru
          _
        // Predicated region
        $region33: #{tpu_custom_call.1} parent=23 // pred_check
          %p206 = pneg %p93
        $region34: #{tpu_custom_call.1} parent=23 // pred_check_branch
          %208 = sbr.rel (%p206) target = $region36
        $region35: #{tpu_custom_call.1} parent=23 // pred_region
          %s209 = sand.u32 %s83, 1
          %s210 = scalar_lea.sflag [#allocation5], %s209
          %s211 = sand.u32 %s83, 1
          %s212 = smul.addr %s211, 16
          %s213 = scalar_lea.vmem [#allocation4], %s212
          %s215 = ssub.s32 256, 256
          %216 = vsyncadd %s210, %s215
          %s217 = smul.addr %s21, 2
          %s218 = smul.addr %s217, 128
          %s219 = scalar_lea.hbm %s3, %s218
          %s220 = sshll.u32 %s213, 4
          %s221 = int_to_ptr.vmem [resolvable:$true] %s220
          %226 = dma.hbm_to_vmem [thread:$0]  %s219, 256, %s221, %s210, 128, 128, 8
        $region36: #{tpu_custom_call.1} parent=23 // pred_fallthru
          _
      $region24: #{tpu_custom_call.1} parent=5 // pred_fallthru
        _
      %p227 = scmp.le.s32.totalorder 1, %s21
      %p228 = scmp.lt.s32.totalorder %s21, 3
      %p229 = pnand %p227, %p228
      %p230 = pneg %p229
      // Predicated region
      $region37: #{tpu_custom_call.1} parent=5 // pred_check
        _
      $region38: #{tpu_custom_call.1} parent=5 // pred_check_branch
        %232 = sbr.rel (%p229) target = $region40
      $region39: #{tpu_custom_call.1} parent=5 // pred_region
        %s233 = ssub.s32 %s21, 1
        %s234 = sand.u32 %s86, 1
        %s235 = scalar_lea.sflag [#allocation5], %s234
        %s236 = sand.u32 %s86, 1
        %s237 = smul.addr %s236, 16
        %s238 = scalar_lea.vmem [#allocation4], %s237
        // Predicated region
        $region41: #{tpu_custom_call.1} parent=39 // pred_check
          %p239 = pneg %p99
        $region42: #{tpu_custom_call.1} parent=39 // pred_check_branch
          %241 = sbr.rel (%p239) target = $region44
        $region43: #{tpu_custom_call.1} parent=39 // pred_region
          %242 = dma.done %s235, 256
        $region44: #{tpu_custom_call.1} parent=39 // pred_fallthru
          _
        %p243 = scmp.lt.s32.totalorder %s26, 1
        %s244 = scalar_select %p243, %s26, 1
        %s245 = smul.addr %s244, 8
        %s246 = scalar_lea.vmem %s1, %s245
        %p247 = pneg %p47
        %p248 = pneg %p44
        %p249 = scmp.lt.s32.totalorder %s26, 1
        %s250 = scalar_select %p249, %s26, 1
        %s251 = smul.addr %s250, 8
        %s252 = scalar_lea.vmem %s2, %s251
        %p253 = pneg %p73
        %p254 = pneg %p70
        %s255 = sand.u32 %s86, 1
        %s256 = scalar_lea.sflag [#allocation5], %s255
        %s257 = sand.u32 %s86, 1
        %s258 = smul.addr %s257, 16
        %s259 = scalar_lea.vmem [#allocation4], %s258
        %p260 = pneg %p99
        %p261 = pneg %p96
        %p262 = pneg %p120
        %p263 = pneg %p117
        %p264 = pneg %p141
        %p265 = pneg %p138
        %p266 = pneg %p167
        %p267 = pneg %p164
        %p268 = scmp.lt.s32.totalorder %s26, 1
        %s269 = scalar_select %p268, %s26, 1
        %s270 = scalar_lea.vmem %s6, %s269
        %p271 = scmp.lt.s32.totalorder %s26, 1
        %s272 = scalar_select %p271, %s26, 1
        %s273 = smul.addr %s272, 8
        %s274 = scalar_lea.vmem %s1, %s273
        %p275 = scmp.lt.s32.totalorder %s26, 1
        %s276 = scalar_select %p275, %s26, 1
        %s277 = smul.addr %s276, 8
        %s278 = scalar_lea.vmem %s2, %s277
        %p279 = scmp.lt.s32.totalorder %s26, 1
        %s280 = scalar_select %p279, %s26, 1
        %s281 = scalar_lea.vmem %s6, %s280
        %v282 = vld [vmem:[%s274] sm:$0xff]
        %v283 = vld [vmem:[%s238] sm:$0xff]
        %v284 = vld [vmem:[%s238 + $0x8] sm:$0xff]
        %v285 = vld [vmem:[%s278] sm:$0xff]
        %v286 = vmul.f32 %v282, %v282
        %vm287 = vcmask 261120
        %v288 = vsel %vm287, %v286, 0.0
        %289 = vadd.xlane.f32.xlu0 %v288
        %v290 = vpop.xlane.xlu0 %289
        %v291 = vadd.f32 %v290, 1e-12
        %v292 = vrsqrt.pop %v291
        %v293 = vmul.f32 %v282, %v292
        %v294 = vmul.f32 %v283, %v283
        %v295 = vmul.f32 %v284, %v284
        %v296 = vsel %vm287, %v294, 0.0
        %297 = vadd.xlane.f32.xlu0 %v296
        %v298 = vpop.xlane.xlu0 %297
        %v299 = vsel %vm287, %v295, 0.0
        %300 = vadd.xlane.f32.xlu0 %v299
        %v301 = vpop.xlane.xlu0 %300
        %v302 = vadd.f32 %v298, 1e-12
        %v303 = vadd.f32 %v301, 1e-12
        %v304 = vrsqrt.pop %v302
        %v305 = vrsqrt.pop %v303
        %v306 = vmul.f32 %v283, %v304
        %v307 = vmul.f32 %v284, %v305
        %v309 = vsel %vm287, %v293, 0
        %v312 = vsel %vm287, %v306, 0
        %v315 = vsel %vm287, %v307, 0
        %317 = vmatprep.subr.mxu0 0.0
        %318 = vmatpush1.xpose.msra.mxu0 0.0
        %319 = vmatprep.subr.mxu0 0.0
        %320 = vmatpush1.xpose.msra.mxu0 0.0
        %321 = vmatprep.subr.mxu0 0.0
        %322 = vmatpush1.xpose.msra.mxu0 0.0
        %323 = vmatprep.subr.mxu0 0.0
        %324 = vmatpush1.xpose.msra.mxu0 0.0
        %325 = vmatprep.subr.mxu0 0.0
        %326 = vmatpush1.xpose.msra.mxu0 0.0
        %327 = vmatprep.subr.mxu0 0.0
        %328 = vmatpush1.xpose.msra.mxu0 0.0
        %329 = vmatprep.subr.mxu0 0.0
        %330 = vmatpush1.xpose.msra.mxu0 0.0
        %331 = vmatprep.subr.mxu0 0.0
        %332 = vmatpush1.xpose.msra.mxu0 0.0
        %333 = vmatprep.subr.mxu0 0.0
        %334 = vmatpush1.xpose.msra.mxu0 0.0
        %335 = vmatprep.subr.mxu0 0.0
        %336 = vmatpush1.xpose.msra.mxu0 0.0
        %337 = vmatprep.subr.mxu0 0.0
        %338 = vmatpush1.xpose.msra.mxu0 0.0
        %339 = vmatprep.subr.mxu0 0.0
        %340 = vmatpush1.xpose.msra.mxu0 0.0
        %341 = vmatprep.subr.mxu0 0.0
        %342 = vmatpush1.xpose.msra.mxu0 0.0
        %343 = vmatprep.subr.mxu0 0.0
        %344 = vmatpush1.xpose.msra.mxu0 0.0
        %345 = vmatprep.subr.mxu0 0.0
        %346 = vmatpush1.xpose.msra.mxu0 %v315
        %347 = vmatprep.subr.mxu0 0.0
        %348 = vmatpush1.xpose.msra.mxu0 %v312
        %349 = vmatprep.subr.mxu0 0.0
        %350 = vmatpush2.xpose.msra.mxu0 0.0
        %351 = vmatprep.subr.mxu0 0.0
        %352 = vmatpush2.xpose.msra.mxu0 0.0
        %353 = vmatprep.subr.mxu0 0.0
        %354 = vmatpush2.xpose.msra.mxu0 0.0
        %355 = vmatprep.subr.mxu0 0.0
        %356 = vmatpush2.xpose.msra.mxu0 0.0
        %357 = vmatprep.subr.mxu0 0.0
        %358 = vmatpush2.xpose.msra.mxu0 0.0
        %359 = vmatprep.subr.mxu0 0.0
        %360 = vmatpush2.xpose.msra.mxu0 0.0
        %361 = vmatprep.subr.mxu0 0.0
        %362 = vmatpush2.xpose.msra.mxu0 0.0
        %363 = vmatprep.subr.mxu0 0.0
        %364 = vmatpush2.xpose.msra.mxu0 0.0
        %365 = vmatprep.subr.mxu0 0.0
        %366 = vmatpush2.xpose.msra.mxu0 0.0
        %367 = vmatprep.subr.mxu0 0.0
        %368 = vmatpush2.xpose.msra.mxu0 0.0
        %369 = vmatprep.subr.mxu0 0.0
        %370 = vmatpush2.xpose.msra.mxu0 0.0
        %371 = vmatprep.subr.mxu0 0.0
        %372 = vmatpush2.xpose.msra.mxu0 0.0
        %373 = vmatprep.subr.mxu0 0.0
        %374 = vmatpush2.xpose.msra.mxu0 0.0
        %375 = vmatprep.subr.mxu0 0.0
        %376 = vmatpush2.xpose.msra.mxu0 0.0
        %377 = vmatprep.subr.mxu0 0.0
        %378 = vmatpush2.xpose.msra.mxu0 0.0
        %379 = vmatprep.subr.mxu0 0.0
        %380 = vmatpush2.xpose.msra.mxu0 0.0
        %381 = vmatprep.mubr.f32.mxu0 0.0
        %382 = vmatmul.mubr.f32.gmra.mxu0 %v309
        %v383 = vpop.f32.mrf.mxu0
        %v384 = vadd.f32 1.0, %v383
        %v385 = vpop.f32.mrf.mxu0
        %386 = vdwg.mxu0
        %v387 = vmul.f32 %v384, 15.0
        %v388 = vfloor.f32 %v387
        %v389 = vmax.f32 %v388, 0.0
        %v390 = vmin.f32 %v389, 29.0
        %v391 = vlaneseq
        %v392 = vshrl.u32 %v391, 7
        %v393 = vadd.s32 %v392, 8
        %v394 = vadd.s32 %v392, 16
        %v395 = vadd.s32 %v392, 24
        %v396 = vcvt.s32.f32 %v392
        %v397 = vcvt.s32.f32 %v393
        %v398 = vcvt.s32.f32 %v394
        %v399 = vcvt.s32.f32 %v395
        %v401 = vcombine.high %v390, %v390
        %v403 = vunpack.c.l.s4 1966171168
        %v404 = vunpack.c.0.s8 %v403
        %v405 = vlaneseq
        %v406 = vshrl.u32 %v405, 7
        %v407 = vsub.s32 %v404, %v406
        %v408 = vrot.slane %v390, %v407
        %v410 = vunpack.c.l.s4 1966171168
        %v411 = vunpack.c.0.s8 %v410
        %v412 = vlaneseq
        %v413 = vshrl.u32 %v412, 7
        %v414 = vsub.s32 %v411, %v413
        %v415 = vrot.slane %v401, %v414
        %v416 = vcombine.high %v408, %v408
        %v417 = vcombine.high %v415, %v415
        %v419 = vunpack.c.l.s4 1966171168
        %v420 = vunpack.c.0.s8 %v419
        %v421 = vlaneseq
        %v422 = vshrl.u32 %v421, 7
        %v423 = vsub.s32 %v420, %v422
        %v424 = vrot.slane %v408, %v423
        %v426 = vunpack.c.l.s4 1966171168
        %v427 = vunpack.c.0.s8 %v426
        %v428 = vlaneseq
        %v429 = vshrl.u32 %v428, 7
        %v430 = vsub.s32 %v427, %v429
        %v431 = vrot.slane %v415, %v430
        %v433 = vunpack.c.l.s4 1966171168
        %v434 = vunpack.c.0.s8 %v433
        %v435 = vlaneseq
        %v436 = vshrl.u32 %v435, 7
        %v437 = vsub.s32 %v434, %v436
        %v438 = vrot.slane %v416, %v437
        %v440 = vunpack.c.l.s4 1966171168
        %v441 = vunpack.c.0.s8 %v440
        %v442 = vlaneseq
        %v443 = vshrl.u32 %v442, 7
        %v444 = vsub.s32 %v441, %v443
        %v445 = vrot.slane %v417, %v444
        %v446 = vcombine.high %v424, %v424
        %v447 = vcombine.high %v431, %v431
        %v448 = vcombine.high %v438, %v438
        %v449 = vcombine.high %v445, %v445
        %v450 = vlaneseq
        %v451 = vshrl.u32 %v450, 7
        %v452 = vsub.s32 0, %v451
        %v453 = vrot.slane %v424, %v452
        %v454 = vlaneseq
        %v455 = vshrl.u32 %v454, 7
        %v456 = vsub.s32 0, %v455
        %v457 = vrot.slane %v438, %v456
        %v458 = vlaneseq
        %v459 = vshrl.u32 %v458, 7
        %v460 = vsub.s32 0, %v459
        %v461 = vrot.slane %v446, %v460
        %v462 = vlaneseq
        %v463 = vshrl.u32 %v462, 7
        %v464 = vsub.s32 0, %v463
        %v465 = vrot.slane %v448, %v464
        %v466 = vlaneseq
        %v467 = vshrl.u32 %v466, 7
        %v468 = vsub.s32 0, %v467
        %v469 = vrot.slane %v431, %v468
        %v470 = vlaneseq
        %v471 = vshrl.u32 %v470, 7
        %v472 = vsub.s32 0, %v471
        %v473 = vrot.slane %v445, %v472
        %v474 = vlaneseq
        %v475 = vshrl.u32 %v474, 7
        %v476 = vsub.s32 0, %v475
        %v477 = vrot.slane %v447, %v476
        %v478 = vlaneseq
        %v479 = vshrl.u32 %v478, 7
        %v480 = vsub.s32 0, %v479
        %v481 = vrot.slane %v449, %v480
        %vm490 = vcmp.eq.f32.partialorder %v453, %v396
        %vm491 = vcmp.eq.f32.partialorder %v453, %v397
        %vm492 = vcmp.eq.f32.partialorder %v453, %v398
        %vm493 = vcmp.eq.f32.partialorder %v453, %v399
        %vm494 = vcmp.eq.f32.partialorder %v457, %v396
        %vm495 = vcmp.eq.f32.partialorder %v457, %v397
        %vm496 = vcmp.eq.f32.partialorder %v457, %v398
        %vm497 = vcmp.eq.f32.partialorder %v457, %v399
        %vm498 = vcmp.eq.f32.partialorder %v461, %v396
        %vm499 = vcmp.eq.f32.partialorder %v461, %v397
        %vm500 = vcmp.eq.f32.partialorder %v461, %v398
        %vm501 = vcmp.eq.f32.partialorder %v461, %v399
        %vm502 = vcmp.eq.f32.partialorder %v465, %v396
        %vm503 = vcmp.eq.f32.partialorder %v465, %v397
        %vm504 = vcmp.eq.f32.partialorder %v465, %v398
        %vm505 = vcmp.eq.f32.partialorder %v465, %v399
        %vm506 = vcmp.eq.f32.partialorder %v469, %v396
        %vm507 = vcmp.eq.f32.partialorder %v469, %v397
        %vm508 = vcmp.eq.f32.partialorder %v469, %v398
        %vm509 = vcmp.eq.f32.partialorder %v469, %v399
        %vm510 = vcmp.eq.f32.partialorder %v473, %v396
        %vm511 = vcmp.eq.f32.partialorder %v473, %v397
        %vm512 = vcmp.eq.f32.partialorder %v473, %v398
        %vm513 = vcmp.eq.f32.partialorder %v473, %v399
        %vm514 = vcmp.eq.f32.partialorder %v477, %v396
        %vm515 = vcmp.eq.f32.partialorder %v477, %v397
        %vm516 = vcmp.eq.f32.partialorder %v477, %v398
        %vm517 = vcmp.eq.f32.partialorder %v477, %v399
        %vm518 = vcmp.eq.f32.partialorder %v481, %v396
        %vm519 = vcmp.eq.f32.partialorder %v481, %v397
        %vm520 = vcmp.eq.f32.partialorder %v481, %v398
        %vm521 = vcmp.eq.f32.partialorder %v481, %v399
        %v522 = vsel %vm490, 1.0, 0.0
        %v523 = vsel %vm491, 1.0, 0.0
        %v524 = vsel %vm492, 1.0, 0.0
        %v525 = vsel %vm493, 1.0, 0.0
        %v526 = vsel %vm494, 1.0, 0.0
        %v527 = vsel %vm495, 1.0, 0.0
        %v528 = vsel %vm496, 1.0, 0.0
        %v529 = vsel %vm497, 1.0, 0.0
        %v530 = vsel %vm498, 1.0, 0.0
        %v531 = vsel %vm499, 1.0, 0.0
        %v532 = vsel %vm500, 1.0, 0.0
        %v533 = vsel %vm501, 1.0, 0.0
        %v534 = vsel %vm502, 1.0, 0.0
        %v535 = vsel %vm503, 1.0, 0.0
        %v536 = vsel %vm504, 1.0, 0.0
        %v537 = vsel %vm505, 1.0, 0.0
        %v538 = vsel %vm506, 1.0, 0.0
        %v539 = vsel %vm507, 1.0, 0.0
        %v540 = vsel %vm508, 1.0, 0.0
        %v541 = vsel %vm509, 1.0, 0.0
        %v542 = vsel %vm510, 1.0, 0.0
        %v543 = vsel %vm511, 1.0, 0.0
        %v544 = vsel %vm512, 1.0, 0.0
        %v545 = vsel %vm513, 1.0, 0.0
        %v546 = vsel %vm514, 1.0, 0.0
        %v547 = vsel %vm515, 1.0, 0.0
        %v548 = vsel %vm516, 1.0, 0.0
        %v549 = vsel %vm517, 1.0, 0.0
        %v550 = vsel %vm518, 1.0, 0.0
        %v551 = vsel %vm519, 1.0, 0.0
        %v552 = vsel %vm520, 1.0, 0.0
        %v553 = vsel %vm521, 1.0, 0.0
        %vm554 = vcmask 130048
        %v555 = vsel %vm554, %v522, 0.0
        %556 = vadd.xlane.f32.xlu0 %v555
        %v557 = vpop.xlane.xlu0 %556
        %v558 = vsel %vm554, %v523, 0.0
        %559 = vadd.xlane.f32.xlu0 %v558
        %v560 = vpop.xlane.xlu0 %559
        %v561 = vsel %vm554, %v524, 0.0
        %562 = vadd.xlane.f32.xlu0 %v561
        %v563 = vpop.xlane.xlu0 %562
        %vm564 = vcmask 128000
        %v565 = vsel %vm564, %v525, 0.0
        %566 = vadd.xlane.f32.xlu0 %v565
        %v567 = vpop.xlane.xlu0 %566
        %v568 = vsel %vm554, %v526, 0.0
        %569 = vadd.xlane.f32.xlu0 %v568
        %v570 = vpop.xlane.xlu0 %569
        %v571 = vsel %vm554, %v527, 0.0
        %572 = vadd.xlane.f32.xlu0 %v571
        %v573 = vpop.xlane.xlu0 %572
        %v574 = vsel %vm554, %v528, 0.0
        %575 = vadd.xlane.f32.xlu0 %v574
        %v576 = vpop.xlane.xlu0 %575
        %v577 = vsel %vm564, %v529, 0.0
        %578 = vadd.xlane.f32.xlu0 %v577
        %v579 = vpop.xlane.xlu0 %578
        %v580 = vsel %vm554, %v530, 0.0
        %581 = vadd.xlane.f32.xlu0 %v580
        %v582 = vpop.xlane.xlu0 %581
        %v583 = vsel %vm554, %v531, 0.0
        %584 = vadd.xlane.f32.xlu0 %v583
        %v585 = vpop.xlane.xlu0 %584
        %v586 = vsel %vm554, %v532, 0.0
        %587 = vadd.xlane.f32.xlu0 %v586
        %v588 = vpop.xlane.xlu0 %587
        %v589 = vsel %vm564, %v533, 0.0
        %590 = vadd.xlane.f32.xlu0 %v589
        %v591 = vpop.xlane.xlu0 %590
        %v592 = vsel %vm554, %v534, 0.0
        %593 = vadd.xlane.f32.xlu0 %v592
        %v594 = vpop.xlane.xlu0 %593
        %v595 = vsel %vm554, %v535, 0.0
        %596 = vadd.xlane.f32.xlu0 %v595
        %v597 = vpop.xlane.xlu0 %596
        %v598 = vsel %vm554, %v536, 0.0
        %599 = vadd.xlane.f32.xlu0 %v598
        %v600 = vpop.xlane.xlu0 %599
        %v601 = vsel %vm564, %v537, 0.0
        %602 = vadd.xlane.f32.xlu0 %v601
        %v603 = vpop.xlane.xlu0 %602
        %v604 = vsel %vm554, %v538, 0.0
        %605 = vadd.xlane.f32.xlu0 %v604
        %v606 = vpop.xlane.xlu0 %605
        %v607 = vsel %vm554, %v539, 0.0
        %608 = vadd.xlane.f32.xlu0 %v607
        %v609 = vpop.xlane.xlu0 %608
        %v610 = vsel %vm554, %v540, 0.0
        %611 = vadd.xlane.f32.xlu0 %v610
        %v612 = vpop.xlane.xlu0 %611
        %v613 = vsel %vm564, %v541, 0.0
        %614 = vadd.xlane.f32.xlu0 %v613
        %v615 = vpop.xlane.xlu0 %614
        %v616 = vsel %vm554, %v542, 0.0
        %617 = vadd.xlane.f32.xlu0 %v616
        %v618 = vpop.xlane.xlu0 %617
        %v619 = vsel %vm554, %v543, 0.0
        %620 = vadd.xlane.f32.xlu0 %v619
        %v621 = vpop.xlane.xlu0 %620
        %v622 = vsel %vm554, %v544, 0.0
        %623 = vadd.xlane.f32.xlu0 %v622
        %v624 = vpop.xlane.xlu0 %623
        %v625 = vsel %vm564, %v545, 0.0
        %626 = vadd.xlane.f32.xlu0 %v625
        %v627 = vpop.xlane.xlu0 %626
        %v628 = vsel %vm554, %v546, 0.0
        %629 = vadd.xlane.f32.xlu0 %v628
        %v630 = vpop.xlane.xlu0 %629
        %v631 = vsel %vm554, %v547, 0.0
        %632 = vadd.xlane.f32.xlu0 %v631
        %v633 = vpop.xlane.xlu0 %632
        %v634 = vsel %vm554, %v548, 0.0
        %635 = vadd.xlane.f32.xlu0 %v634
        %v636 = vpop.xlane.xlu0 %635
        %v637 = vsel %vm564, %v549, 0.0
        %638 = vadd.xlane.f32.xlu0 %v637
        %v639 = vpop.xlane.xlu0 %638
        %v640 = vsel %vm554, %v550, 0.0
        %641 = vadd.xlane.f32.xlu0 %v640
        %v642 = vpop.xlane.xlu0 %641
        %v643 = vsel %vm554, %v551, 0.0
        %644 = vadd.xlane.f32.xlu0 %v643
        %v645 = vpop.xlane.xlu0 %644
        %v646 = vsel %vm554, %v552, 0.0
        %647 = vadd.xlane.f32.xlu0 %v646
        %v648 = vpop.xlane.xlu0 %647
        %v649 = vsel %vm564, %v553, 0.0
        %650 = vadd.xlane.f32.xlu0 %v649
        %v651 = vpop.xlane.xlu0 %650
        %v652 = vadd.f32 %v557, 0.0
        %v653 = vadd.f32 %v560, 0.0
        %v654 = vadd.f32 %v563, 0.0
        %v655 = vadd.f32 %v567, 0.0
        %v656 = vadd.f32 %v570, 0.0
        %v657 = vadd.f32 %v573, 0.0
        %v658 = vadd.f32 %v576, 0.0
        %v659 = vadd.f32 %v579, 0.0
        %v660 = vadd.f32 %v582, 0.0
        %v661 = vadd.f32 %v585, 0.0
        %v662 = vadd.f32 %v588, 0.0
        %v663 = vadd.f32 %v591, 0.0
        %v664 = vadd.f32 %v594, 0.0
        %v665 = vadd.f32 %v597, 0.0
        %v666 = vadd.f32 %v600, 0.0
        %v667 = vadd.f32 %v603, 0.0
        %v668 = vadd.f32 %v606, 0.0
        %v669 = vadd.f32 %v609, 0.0
        %v670 = vadd.f32 %v612, 0.0
        %v671 = vadd.f32 %v615, 0.0
        %v672 = vadd.f32 %v618, 0.0
        %v673 = vadd.f32 %v621, 0.0
        %v674 = vadd.f32 %v624, 0.0
        %v675 = vadd.f32 %v627, 0.0
        %v676 = vadd.f32 %v630, 0.0
        %v677 = vadd.f32 %v633, 0.0
        %v678 = vadd.f32 %v636, 0.0
        %v679 = vadd.f32 %v639, 0.0
        %v680 = vadd.f32 %v642, 0.0
        %v681 = vadd.f32 %v645, 0.0
        %v682 = vadd.f32 %v648, 0.0
        %v683 = vadd.f32 %v651, 0.0
        %v684 = vadd.f32 %v652, 1.0
        %v685 = vadd.f32 %v653, 1.0
        %v686 = vadd.f32 %v654, 1.0
        %v687 = vadd.f32 %v655, 1.0
        %v688 = vadd.f32 %v656, 1.0
        %v689 = vadd.f32 %v657, 1.0
        %v690 = vadd.f32 %v658, 1.0
        %v691 = vadd.f32 %v659, 1.0
        %v692 = vadd.f32 %v660, 1.0
        %v693 = vadd.f32 %v661, 1.0
        %v694 = vadd.f32 %v662, 1.0
        %v695 = vadd.f32 %v663, 1.0
        %v696 = vadd.f32 %v664, 1.0
        %v697 = vadd.f32 %v665, 1.0
        %v698 = vadd.f32 %v666, 1.0
        %v699 = vadd.f32 %v667, 1.0
        %v700 = vadd.f32 %v668, 1.0
        %v701 = vadd.f32 %v669, 1.0
        %v702 = vadd.f32 %v670, 1.0
        %v703 = vadd.f32 %v671, 1.0
        %v704 = vadd.f32 %v672, 1.0
        %v705 = vadd.f32 %v673, 1.0
        %v706 = vadd.f32 %v674, 1.0
        %v707 = vadd.f32 %v675, 1.0
        %v708 = vadd.f32 %v676, 1.0
        %v709 = vadd.f32 %v677, 1.0
        %v710 = vadd.f32 %v678, 1.0
        %v711 = vadd.f32 %v679, 1.0
        %v712 = vadd.f32 %v680, 1.0
        %v713 = vadd.f32 %v681, 1.0
        %v714 = vadd.f32 %v682, 1.0
        %v715 = vadd.f32 %v683, 1.0
        %v716 = vlog2.pop %v684
        %v717 = vmul.f32 %v716, 0.6931472
        %v718 = vlog2.pop %v685
        %v719 = vmul.f32 %v718, 0.6931472
        %v720 = vlog2.pop %v686
        %v721 = vmul.f32 %v720, 0.6931472
        %v722 = vlog2.pop %v687
        %v723 = vmul.f32 %v722, 0.6931472
        %v724 = vlog2.pop %v688
        %v725 = vmul.f32 %v724, 0.6931472
        %v726 = vlog2.pop %v689
        %v727 = vmul.f32 %v726, 0.6931472
        %v728 = vlog2.pop %v690
        %v729 = vmul.f32 %v728, 0.6931472
        %v730 = vlog2.pop %v691
        %v731 = vmul.f32 %v730, 0.6931472
        %v732 = vlog2.pop %v692
        %v733 = vmul.f32 %v732, 0.6931472
        %v734 = vlog2.pop %v693
        %v735 = vmul.f32 %v734, 0.6931472
        %v736 = vlog2.pop %v694
        %v737 = vmul.f32 %v736, 0.6931472
        %v738 = vlog2.pop %v695
        %v739 = vmul.f32 %v738, 0.6931472
        %v740 = vlog2.pop %v696
        %v741 = vmul.f32 %v740, 0.6931472
        %v742 = vlog2.pop %v697
        %v743 = vmul.f32 %v742, 0.6931472
        %v744 = vlog2.pop %v698
        %v745 = vmul.f32 %v744, 0.6931472
        %v746 = vlog2.pop %v699
        %v747 = vmul.f32 %v746, 0.6931472
        %v748 = vlog2.pop %v700
        %v749 = vmul.f32 %v748, 0.6931472
        %v750 = vlog2.pop %v701
        %v751 = vmul.f32 %v750, 0.6931472
        %v752 = vlog2.pop %v702
        %v753 = vmul.f32 %v752, 0.6931472
        %v754 = vlog2.pop %v703
        %v755 = vmul.f32 %v754, 0.6931472
        %v756 = vlog2.pop %v704
        %v757 = vmul.f32 %v756, 0.6931472
        %v758 = vlog2.pop %v705
        %v759 = vmul.f32 %v758, 0.6931472
        %v760 = vlog2.pop %v706
        %v761 = vmul.f32 %v760, 0.6931472
        %v762 = vlog2.pop %v707
        %v763 = vmul.f32 %v762, 0.6931472
        %v764 = vlog2.pop %v708
        %v765 = vmul.f32 %v764, 0.6931472
        %v766 = vlog2.pop %v709
        %v767 = vmul.f32 %v766, 0.6931472
        %v768 = vlog2.pop %v710
        %v769 = vmul.f32 %v768, 0.6931472
        %v770 = vlog2.pop %v711
        %v771 = vmul.f32 %v770, 0.6931472
        %v772 = vlog2.pop %v712
        %v773 = vmul.f32 %v772, 0.6931472
        %v774 = vlog2.pop %v713
        %v775 = vmul.f32 %v774, 0.6931472
        %v776 = vlog2.pop %v714
        %v777 = vmul.f32 %v776, 0.6931472
        %v778 = vlog2.pop %v715
        %v779 = vmul.f32 %v778, 0.6931472
        %v780 = vld [vmem:[%s4] sm:$0x7f]
        %v782 = vlaneseq
        %v783 = vshrl.u32 %v782, 7
        %v784 = vsub.s32 0, %v783
        %v785 = vrot.slane %v780, %v784
        %787 = vbcast.lane.b32.xlu0 %v785, 256
        %v788 = vpop.permute.xlu0 %787
        %s790 = sor.u32 256, 8
        %791 = vbcast.lane.b32.xlu0 %v785, %s790
        %v792 = vpop.permute.xlu0 %791
        %s794 = sor.u32 256, 16
        %795 = vbcast.lane.b32.xlu0 %v785, %s794
        %v796 = vpop.permute.xlu0 %795
        %s798 = sor.u32 256, 24
        %799 = vbcast.lane.b32.xlu0 %v785, %s798
        %v800 = vpop.permute.xlu0 %799
        %v801 = vlaneseq
        %v802 = vshrl.u32 %v801, 7
        %v803 = vsub.s32 1, %v802
        %v804 = vrot.slane %v780, %v803
        %806 = vbcast.lane.b32.xlu0 %v804, 256
        %v807 = vpop.permute.xlu0 %806
        %s809 = sor.u32 256, 8
        %810 = vbcast.lane.b32.xlu0 %v804, %s809
        %v811 = vpop.permute.xlu0 %810
        %s813 = sor.u32 256, 16
        %814 = vbcast.lane.b32.xlu0 %v804, %s813
        %v815 = vpop.permute.xlu0 %814
        %s817 = sor.u32 256, 24
        %818 = vbcast.lane.b32.xlu0 %v804, %s817
        %v819 = vpop.permute.xlu0 %818
        %v820 = vlaneseq
        %v821 = vshrl.u32 %v820, 7
        %v822 = vsub.s32 2, %v821
        %v823 = vrot.slane %v780, %v822
        %825 = vbcast.lane.b32.xlu0 %v823, 256
        %v826 = vpop.permute.xlu0 %825
        %s828 = sor.u32 256, 8
        %829 = vbcast.lane.b32.xlu0 %v823, %s828
        %v830 = vpop.permute.xlu0 %829
        %s832 = sor.u32 256, 16
        %833 = vbcast.lane.b32.xlu0 %v823, %s832
        %v834 = vpop.permute.xlu0 %833
        %s836 = sor.u32 256, 24
        %837 = vbcast.lane.b32.xlu0 %v823, %s836
        %v838 = vpop.permute.xlu0 %837
        %v839 = vlaneseq
        %v840 = vshrl.u32 %v839, 7
        %v841 = vsub.s32 3, %v840
        %v842 = vrot.slane %v780, %v841
        %844 = vbcast.lane.b32.xlu0 %v842, 256
        %v845 = vpop.permute.xlu0 %844
        %s847 = sor.u32 256, 8
        %848 = vbcast.lane.b32.xlu0 %v842, %s847
        %v849 = vpop.permute.xlu0 %848
        %s851 = sor.u32 256, 16
        %852 = vbcast.lane.b32.xlu0 %v842, %s851
        %v853 = vpop.permute.xlu0 %852
        %s855 = sor.u32 256, 24
        %856 = vbcast.lane.b32.xlu0 %v842, %s855
        %v857 = vpop.permute.xlu0 %856
        %v858 = vlaneseq
        %v859 = vshrl.u32 %v858, 7
        %v860 = vsub.s32 4, %v859
        %v861 = vrot.slane %v780, %v860
        %863 = vbcast.lane.b32.xlu0 %v861, 256
        %v864 = vpop.permute.xlu0 %863
        %s866 = sor.u32 256, 8
        %867 = vbcast.lane.b32.xlu0 %v861, %s866
        %v868 = vpop.permute.xlu0 %867
        %s870 = sor.u32 256, 16
        %871 = vbcast.lane.b32.xlu0 %v861, %s870
        %v872 = vpop.permute.xlu0 %871
        %s874 = sor.u32 256, 24
        %875 = vbcast.lane.b32.xlu0 %v861, %s874
        %v876 = vpop.permute.xlu0 %875
        %v897 = vmul.f32 %v717, %v788
        %v898 = vmul.f32 %v719, %v792
        %v899 = vmul.f32 %v721, %v796
        %v900 = vmul.f32 %v723, %v800
        %v901 = vmul.f32 %v717, %v807
        %v902 = vmul.f32 %v719, %v811
        %v903 = vmul.f32 %v721, %v815
        %v904 = vmul.f32 %v723, %v819
        %v905 = vmul.f32 %v717, %v826
        %v906 = vmul.f32 %v719, %v830
        %v907 = vmul.f32 %v721, %v834
        %v908 = vmul.f32 %v723, %v838
        %v909 = vmul.f32 %v717, %v845
        %v910 = vmul.f32 %v719, %v849
        %v911 = vmul.f32 %v721, %v853
        %v912 = vmul.f32 %v723, %v857
        %v913 = vmul.f32 %v717, %v864
        %v914 = vmul.f32 %v719, %v868
        %v915 = vmul.f32 %v721, %v872
        %v916 = vmul.f32 %v723, %v876
        %v917 = vmul.f32 %v725, %v788
        %v918 = vmul.f32 %v727, %v792
        %v919 = vmul.f32 %v729, %v796
        %v920 = vmul.f32 %v731, %v800
        %v921 = vmul.f32 %v725, %v807
        %v922 = vmul.f32 %v727, %v811
        %v923 = vmul.f32 %v729, %v815
        %v924 = vmul.f32 %v731, %v819
        %v925 = vmul.f32 %v725, %v826
        %v926 = vmul.f32 %v727, %v830
        %v927 = vmul.f32 %v729, %v834
        %v928 = vmul.f32 %v731, %v838
        %v929 = vmul.f32 %v725, %v845
        %v930 = vmul.f32 %v727, %v849
        %v931 = vmul.f32 %v729, %v853
        %v932 = vmul.f32 %v731, %v857
        %v933 = vmul.f32 %v725, %v864
        %v934 = vmul.f32 %v727, %v868
        %v935 = vmul.f32 %v729, %v872
        %v936 = vmul.f32 %v731, %v876
        %v937 = vmul.f32 %v733, %v788
        %v938 = vmul.f32 %v735, %v792
        %v939 = vmul.f32 %v737, %v796
        %v940 = vmul.f32 %v739, %v800
        %v941 = vmul.f32 %v733, %v807
        %v942 = vmul.f32 %v735, %v811
        %v943 = vmul.f32 %v737, %v815
        %v944 = vmul.f32 %v739, %v819
        %v945 = vmul.f32 %v733, %v826
        %v946 = vmul.f32 %v735, %v830
        %v947 = vmul.f32 %v737, %v834
        %v948 = vmul.f32 %v739, %v838
        %v949 = vmul.f32 %v733, %v845
        %v950 = vmul.f32 %v735, %v849
        %v951 = vmul.f32 %v737, %v853
        %v952 = vmul.f32 %v739, %v857
        %v953 = vmul.f32 %v733, %v864
        %v954 = vmul.f32 %v735, %v868
        %v955 = vmul.f32 %v737, %v872
        %v956 = vmul.f32 %v739, %v876
        %v957 = vmul.f32 %v741, %v788
        %v958 = vmul.f32 %v743, %v792
        %v959 = vmul.f32 %v745, %v796
        %v960 = vmul.f32 %v747, %v800
        %v961 = vmul.f32 %v741, %v807
        %v962 = vmul.f32 %v743, %v811
        %v963 = vmul.f32 %v745, %v815
        %v964 = vmul.f32 %v747, %v819
        %v965 = vmul.f32 %v741, %v826
        %v966 = vmul.f32 %v743, %v830
        %v967 = vmul.f32 %v745, %v834
        %v968 = vmul.f32 %v747, %v838
        %v969 = vmul.f32 %v741, %v845
        %v970 = vmul.f32 %v743, %v849
        %v971 = vmul.f32 %v745, %v853
        %v972 = vmul.f32 %v747, %v857
        %v973 = vmul.f32 %v741, %v864
        %v974 = vmul.f32 %v743, %v868
        %v975 = vmul.f32 %v745, %v872
        %v976 = vmul.f32 %v747, %v876
        %v977 = vmul.f32 %v749, %v788
        %v978 = vmul.f32 %v751, %v792
        %v979 = vmul.f32 %v753, %v796
        %v980 = vmul.f32 %v755, %v800
        %v981 = vmul.f32 %v749, %v807
        %v982 = vmul.f32 %v751, %v811
        %v983 = vmul.f32 %v753, %v815
        %v984 = vmul.f32 %v755, %v819
        %v985 = vmul.f32 %v749, %v826
        %v986 = vmul.f32 %v751, %v830
        %v987 = vmul.f32 %v753, %v834
        %v988 = vmul.f32 %v755, %v838
        %v989 = vmul.f32 %v749, %v845
        %v990 = vmul.f32 %v751, %v849
        %v991 = vmul.f32 %v753, %v853
        %v992 = vmul.f32 %v755, %v857
        %v993 = vmul.f32 %v749, %v864
        %v994 = vmul.f32 %v751, %v868
        %v995 = vmul.f32 %v753, %v872
        %v996 = vmul.f32 %v755, %v876
        %v997 = vmul.f32 %v757, %v788
        %v998 = vmul.f32 %v759, %v792
        %v999 = vmul.f32 %v761, %v796
        %v1000 = vmul.f32 %v763, %v800
        %v1001 = vmul.f32 %v757, %v807
        %v1002 = vmul.f32 %v759, %v811
        %v1003 = vmul.f32 %v761, %v815
        %v1004 = vmul.f32 %v763, %v819
        %v1005 = vmul.f32 %v757, %v826
        %v1006 = vmul.f32 %v759, %v830
        %v1007 = vmul.f32 %v761, %v834
        %v1008 = vmul.f32 %v763, %v838
        %v1009 = vmul.f32 %v757, %v845
        %v1010 = vmul.f32 %v759, %v849
        %v1011 = vmul.f32 %v761, %v853
        %v1012 = vmul.f32 %v763, %v857
        %v1013 = vmul.f32 %v757, %v864
        %v1014 = vmul.f32 %v759, %v868
        %v1015 = vmul.f32 %v761, %v872
        %v1016 = vmul.f32 %v763, %v876
        %v1017 = vmul.f32 %v765, %v788
        %v1018 = vmul.f32 %v767, %v792
        %v1019 = vmul.f32 %v769, %v796
        %v1020 = vmul.f32 %v771, %v800
        %v1021 = vmul.f32 %v765, %v807
        %v1022 = vmul.f32 %v767, %v811
        %v1023 = vmul.f32 %v769, %v815
        %v1024 = vmul.f32 %v771, %v819
        %v1025 = vmul.f32 %v765, %v826
        %v1026 = vmul.f32 %v767, %v830
        %v1027 = vmul.f32 %v769, %v834
        %v1028 = vmul.f32 %v771, %v838
        %v1029 = vmul.f32 %v765, %v845
        %v1030 = vmul.f32 %v767, %v849
        %v1031 = vmul.f32 %v769, %v853
        %v1032 = vmul.f32 %v771, %v857
        %v1033 = vmul.f32 %v765, %v864
        %v1034 = vmul.f32 %v767, %v868
        %v1035 = vmul.f32 %v769, %v872
        %v1036 = vmul.f32 %v771, %v876
        %v1037 = vmul.f32 %v773, %v788
        %v1038 = vmul.f32 %v775, %v792
        %v1039 = vmul.f32 %v777, %v796
        %v1040 = vmul.f32 %v779, %v800
        %v1041 = vmul.f32 %v773, %v807
        %v1042 = vmul.f32 %v775, %v811
        %v1043 = vmul.f32 %v777, %v815
        %v1044 = vmul.f32 %v779, %v819
        %v1045 = vmul.f32 %v773, %v826
        %v1046 = vmul.f32 %v775, %v830
        %v1047 = vmul.f32 %v777, %v834
        %v1048 = vmul.f32 %v779, %v838
        %v1049 = vmul.f32 %v773, %v845
        %v1050 = vmul.f32 %v775, %v849
        %v1051 = vmul.f32 %v777, %v853
        %v1052 = vmul.f32 %v779, %v857
        %v1053 = vmul.f32 %v773, %v864
        %v1054 = vmul.f32 %v775, %v868
        %v1055 = vmul.f32 %v777, %v872
        %v1056 = vmul.f32 %v779, %v876
        %1217 = vset.pattern.permute.xlu0 0
        %1218 = vperm.xlu0 %1217, %v897
        %v1219 = vpop.permute.xlu0 %1218
        %1220 = vset.pattern.permute.xlu0 0
        %1221 = vperm.xlu0 %1220, %v898
        %v1222 = vpop.permute.xlu0 %1221
        %1223 = vset.pattern.permute.xlu0 0
        %1224 = vperm.xlu0 %1223, %v899
        %v1225 = vpop.permute.xlu0 %1224
        %1226 = vset.pattern.permute.xlu0 0
        %1227 = vperm.xlu0 %1226, %v900
        %v1228 = vpop.permute.xlu0 %1227
        %1229 = vset.pattern.permute.xlu0 0
        %1230 = vperm.xlu0 %1229, %v901
        %v1231 = vpop.permute.xlu0 %1230
        %1232 = vset.pattern.permute.xlu0 0
        %1233 = vperm.xlu0 %1232, %v902
        %v1234 = vpop.permute.xlu0 %1233
        %1235 = vset.pattern.permute.xlu0 0
        %1236 = vperm.xlu0 %1235, %v903
        %v1237 = vpop.permute.xlu0 %1236
        %1238 = vset.pattern.permute.xlu0 0
        %1239 = vperm.xlu0 %1238, %v904
        %v1240 = vpop.permute.xlu0 %1239
        %1241 = vset.pattern.permute.xlu0 0
        %1242 = vperm.xlu0 %1241, %v905
        %v1243 = vpop.permute.xlu0 %1242
        %1244 = vset.pattern.permute.xlu0 0
        %1245 = vperm.xlu0 %1244, %v906
        %v1246 = vpop.permute.xlu0 %1245
        %1247 = vset.pattern.permute.xlu0 0
        %1248 = vperm.xlu0 %1247, %v907
        %v1249 = vpop.permute.xlu0 %1248
        %1250 = vset.pattern.permute.xlu0 0
        %1251 = vperm.xlu0 %1250, %v908
        %v1252 = vpop.permute.xlu0 %1251
        %1253 = vset.pattern.permute.xlu0 0
        %1254 = vperm.xlu0 %1253, %v909
        %v1255 = vpop.permute.xlu0 %1254
        %1256 = vset.pattern.permute.xlu0 0
        %1257 = vperm.xlu0 %1256, %v910
        %v1258 = vpop.permute.xlu0 %1257
        %1259 = vset.pattern.permute.xlu0 0
        %1260 = vperm.xlu0 %1259, %v911
        %v1261 = vpop.permute.xlu0 %1260
        %1262 = vset.pattern.permute.xlu0 0
        %1263 = vperm.xlu0 %1262, %v912
        %v1264 = vpop.permute.xlu0 %1263
        %1265 = vset.pattern.permute.xlu0 0
        %1266 = vperm.xlu0 %1265, %v913
        %v1267 = vpop.permute.xlu0 %1266
        %1268 = vset.pattern.permute.xlu0 0
        %1269 = vperm.xlu0 %1268, %v914
        %v1270 = vpop.permute.xlu0 %1269
        %1271 = vset.pattern.permute.xlu0 0
        %1272 = vperm.xlu0 %1271, %v915
        %v1273 = vpop.permute.xlu0 %1272
        %1274 = vset.pattern.permute.xlu0 0
        %1275 = vperm.xlu0 %1274, %v916
        %v1276 = vpop.permute.xlu0 %1275
        %1277 = vset.pattern.permute.xlu0 0
        %1278 = vperm.xlu0 %1277, %v917
        %v1279 = vpop.permute.xlu0 %1278
        %1280 = vset.pattern.permute.xlu0 0
        %1281 = vperm.xlu0 %1280, %v918
        %v1282 = vpop.permute.xlu0 %1281
        %1283 = vset.pattern.permute.xlu0 0
        %1284 = vperm.xlu0 %1283, %v919
        %v1285 = vpop.permute.xlu0 %1284
        %1286 = vset.pattern.permute.xlu0 0
        %1287 = vperm.xlu0 %1286, %v920
        %v1288 = vpop.permute.xlu0 %1287
        %1289 = vset.pattern.permute.xlu0 0
        %1290 = vperm.xlu0 %1289, %v921
        %v1291 = vpop.permute.xlu0 %1290
        %1292 = vset.pattern.permute.xlu0 0
        %1293 = vperm.xlu0 %1292, %v922
        %v1294 = vpop.permute.xlu0 %1293
        %1295 = vset.pattern.permute.xlu0 0
        %1296 = vperm.xlu0 %1295, %v923
        %v1297 = vpop.permute.xlu0 %1296
        %1298 = vset.pattern.permute.xlu0 0
        %1299 = vperm.xlu0 %1298, %v924
        %v1300 = vpop.permute.xlu0 %1299
        %1301 = vset.pattern.permute.xlu0 0
        %1302 = vperm.xlu0 %1301, %v925
        %v1303 = vpop.permute.xlu0 %1302
        %1304 = vset.pattern.permute.xlu0 0
        %1305 = vperm.xlu0 %1304, %v926
        %v1306 = vpop.permute.xlu0 %1305
        %1307 = vset.pattern.permute.xlu0 0
        %1308 = vperm.xlu0 %1307, %v927
        %v1309 = vpop.permute.xlu0 %1308
        %1310 = vset.pattern.permute.xlu0 0
        %1311 = vperm.xlu0 %1310, %v928
        %v1312 = vpop.permute.xlu0 %1311
        %1313 = vset.pattern.permute.xlu0 0
        %1314 = vperm.xlu0 %1313, %v929
        %v1315 = vpop.permute.xlu0 %1314
        %1316 = vset.pattern.permute.xlu0 0
        %1317 = vperm.xlu0 %1316, %v930
        %v1318 = vpop.permute.xlu0 %1317
        %1319 = vset.pattern.permute.xlu0 0
        %1320 = vperm.xlu0 %1319, %v931
        %v1321 = vpop.permute.xlu0 %1320
        %1322 = vset.pattern.permute.xlu0 0
        %1323 = vperm.xlu0 %1322, %v932
        %v1324 = vpop.permute.xlu0 %1323
        %1325 = vset.pattern.permute.xlu0 0
        %1326 = vperm.xlu0 %1325, %v933
        %v1327 = vpop.permute.xlu0 %1326
        %1328 = vset.pattern.permute.xlu0 0
        %1329 = vperm.xlu0 %1328, %v934
        %v1330 = vpop.permute.xlu0 %1329
        %1331 = vset.pattern.permute.xlu0 0
        %1332 = vperm.xlu0 %1331, %v935
        %v1333 = vpop.permute.xlu0 %1332
        %1334 = vset.pattern.permute.xlu0 0
        %1335 = vperm.xlu0 %1334, %v936
        %v1336 = vpop.permute.xlu0 %1335
        %1337 = vset.pattern.permute.xlu0 0
        %1338 = vperm.xlu0 %1337, %v937
        %v1339 = vpop.permute.xlu0 %1338
        %1340 = vset.pattern.permute.xlu0 0
        %1341 = vperm.xlu0 %1340, %v938
        %v1342 = vpop.permute.xlu0 %1341
        %1343 = vset.pattern.permute.xlu0 0
        %1344 = vperm.xlu0 %1343, %v939
        %v1345 = vpop.permute.xlu0 %1344
        %1346 = vset.pattern.permute.xlu0 0
        %1347 = vperm.xlu0 %1346, %v940
        %v1348 = vpop.permute.xlu0 %1347
        %1349 = vset.pattern.permute.xlu0 0
        %1350 = vperm.xlu0 %1349, %v941
        %v1351 = vpop.permute.xlu0 %1350
        %1352 = vset.pattern.permute.xlu0 0
        %1353 = vperm.xlu0 %1352, %v942
        %v1354 = vpop.permute.xlu0 %1353
        %1355 = vset.pattern.permute.xlu0 0
        %1356 = vperm.xlu0 %1355, %v943
        %v1357 = vpop.permute.xlu0 %1356
        %1358 = vset.pattern.permute.xlu0 0
        %1359 = vperm.xlu0 %1358, %v944
        %v1360 = vpop.permute.xlu0 %1359
        %1361 = vset.pattern.permute.xlu0 0
        %1362 = vperm.xlu0 %1361, %v945
        %v1363 = vpop.permute.xlu0 %1362
        %1364 = vset.pattern.permute.xlu0 0
        %1365 = vperm.xlu0 %1364, %v946
        %v1366 = vpop.permute.xlu0 %1365
        %1367 = vset.pattern.permute.xlu0 0
        %1368 = vperm.xlu0 %1367, %v947
        %v1369 = vpop.permute.xlu0 %1368
        %1370 = vset.pattern.permute.xlu0 0
        %1371 = vperm.xlu0 %1370, %v948
        %v1372 = vpop.permute.xlu0 %1371
        %1373 = vset.pattern.permute.xlu0 0
        %1374 = vperm.xlu0 %1373, %v949
        %v1375 = vpop.permute.xlu0 %1374
        %1376 = vset.pattern.permute.xlu0 0
        %1377 = vperm.xlu0 %1376, %v950
        %v1378 = vpop.permute.xlu0 %1377
        %1379 = vset.pattern.permute.xlu0 0
        %1380 = vperm.xlu0 %1379, %v951
        %v1381 = vpop.permute.xlu0 %1380
        %1382 = vset.pattern.permute.xlu0 0
        %1383 = vperm.xlu0 %1382, %v952
        %v1384 = vpop.permute.xlu0 %1383
        %1385 = vset.pattern.permute.xlu0 0
        %1386 = vperm.xlu0 %1385, %v953
        %v1387 = vpop.permute.xlu0 %1386
        %1388 = vset.pattern.permute.xlu0 0
        %1389 = vperm.xlu0 %1388, %v954
        %v1390 = vpop.permute.xlu0 %1389
        %1391 = vset.pattern.permute.xlu0 0
        %1392 = vperm.xlu0 %1391, %v955
        %v1393 = vpop.permute.xlu0 %1392
        %1394 = vset.pattern.permute.xlu0 0
        %1395 = vperm.xlu0 %1394, %v956
        %v1396 = vpop.permute.xlu0 %1395
        %1397 = vset.pattern.permute.xlu0 0
        %1398 = vperm.xlu0 %1397, %v957
        %v1399 = vpop.permute.xlu0 %1398
        %1400 = vset.pattern.permute.xlu0 0
        %1401 = vperm.xlu0 %1400, %v958
        %v1402 = vpop.permute.xlu0 %1401
        %1403 = vset.pattern.permute.xlu0 0
        %1404 = vperm.xlu0 %1403, %v959
        %v1405 = vpop.permute.xlu0 %1404
        %1406 = vset.pattern.permute.xlu0 0
        %1407 = vperm.xlu0 %1406, %v960
        %v1408 = vpop.permute.xlu0 %1407
        %1409 = vset.pattern.permute.xlu0 0
        %1410 = vperm.xlu0 %1409, %v961
        %v1411 = vpop.permute.xlu0 %1410
        %1412 = vset.pattern.permute.xlu0 0
        %1413 = vperm.xlu0 %1412, %v962
        %v1414 = vpop.permute.xlu0 %1413
        %1415 = vset.pattern.permute.xlu0 0
        %1416 = vperm.xlu0 %1415, %v963
        %v1417 = vpop.permute.xlu0 %1416
        %1418 = vset.pattern.permute.xlu0 0
        %1419 = vperm.xlu0 %1418, %v964
        %v1420 = vpop.permute.xlu0 %1419
        %1421 = vset.pattern.permute.xlu0 0
        %1422 = vperm.xlu0 %1421, %v965
        %v1423 = vpop.permute.xlu0 %1422
        %1424 = vset.pattern.permute.xlu0 0
        %1425 = vperm.xlu0 %1424, %v966
        %v1426 = vpop.permute.xlu0 %1425
        %1427 = vset.pattern.permute.xlu0 0
        %1428 = vperm.xlu0 %1427, %v967
        %v1429 = vpop.permute.xlu0 %1428
        %1430 = vset.pattern.permute.xlu0 0
        %1431 = vperm.xlu0 %1430, %v968
        %v1432 = vpop.permute.xlu0 %1431
        %1433 = vset.pattern.permute.xlu0 0
        %1434 = vperm.xlu0 %1433, %v969
        %v1435 = vpop.permute.xlu0 %1434
        %1436 = vset.pattern.permute.xlu0 0
        %1437 = vperm.xlu0 %1436, %v970
        %v1438 = vpop.permute.xlu0 %1437
        %1439 = vset.pattern.permute.xlu0 0
        %1440 = vperm.xlu0 %1439, %v971
        %v1441 = vpop.permute.xlu0 %1440
        %1442 = vset.pattern.permute.xlu0 0
        %1443 = vperm.xlu0 %1442, %v972
        %v1444 = vpop.permute.xlu0 %1443
        %1445 = vset.pattern.permute.xlu0 0
        %1446 = vperm.xlu0 %1445, %v973
        %v1447 = vpop.permute.xlu0 %1446
        %1448 = vset.pattern.permute.xlu0 0
        %1449 = vperm.xlu0 %1448, %v974
        %v1450 = vpop.permute.xlu0 %1449
        %1451 = vset.pattern.permute.xlu0 0
        %1452 = vperm.xlu0 %1451, %v975
        %v1453 = vpop.permute.xlu0 %1452
        %1454 = vset.pattern.permute.xlu0 0
        %1455 = vperm.xlu0 %1454, %v976
        %v1456 = vpop.permute.xlu0 %1455
        %1457 = vset.pattern.permute.xlu0 0
        %1458 = vperm.xlu0 %1457, %v977
        %v1459 = vpop.permute.xlu0 %1458
        %1460 = vset.pattern.permute.xlu0 0
        %1461 = vperm.xlu0 %1460, %v978
        %v1462 = vpop.permute.xlu0 %1461
        %1463 = vset.pattern.permute.xlu0 0
        %1464 = vperm.xlu0 %1463, %v979
        %v1465 = vpop.permute.xlu0 %1464
        %1466 = vset.pattern.permute.xlu0 0
        %1467 = vperm.xlu0 %1466, %v980
        %v1468 = vpop.permute.xlu0 %1467
        %1469 = vset.pattern.permute.xlu0 0
        %1470 = vperm.xlu0 %1469, %v981
        %v1471 = vpop.permute.xlu0 %1470
        %1472 = vset.pattern.permute.xlu0 0
        %1473 = vperm.xlu0 %1472, %v982
        %v1474 = vpop.permute.xlu0 %1473
        %1475 = vset.pattern.permute.xlu0 0
        %1476 = vperm.xlu0 %1475, %v983
        %v1477 = vpop.permute.xlu0 %1476
        %1478 = vset.pattern.permute.xlu0 0
        %1479 = vperm.xlu0 %1478, %v984
        %v1480 = vpop.permute.xlu0 %1479
        %1481 = vset.pattern.permute.xlu0 0
        %1482 = vperm.xlu0 %1481, %v985
        %v1483 = vpop.permute.xlu0 %1482
        %1484 = vset.pattern.permute.xlu0 0
        %1485 = vperm.xlu0 %1484, %v986
        %v1486 = vpop.permute.xlu0 %1485
        %1487 = vset.pattern.permute.xlu0 0
        %1488 = vperm.xlu0 %1487, %v987
        %v1489 = vpop.permute.xlu0 %1488
        %1490 = vset.pattern.permute.xlu0 0
        %1491 = vperm.xlu0 %1490, %v988
        %v1492 = vpop.permute.xlu0 %1491
        %1493 = vset.pattern.permute.xlu0 0
        %1494 = vperm.xlu0 %1493, %v989
        %v1495 = vpop.permute.xlu0 %1494
        %1496 = vset.pattern.permute.xlu0 0
        %1497 = vperm.xlu0 %1496, %v990
        %v1498 = vpop.permute.xlu0 %1497
        %1499 = vset.pattern.permute.xlu0 0
        %1500 = vperm.xlu0 %1499, %v991
        %v1501 = vpop.permute.xlu0 %1500
        %1502 = vset.pattern.permute.xlu0 0
        %1503 = vperm.xlu0 %1502, %v992
        %v1504 = vpop.permute.xlu0 %1503
        %1505 = vset.pattern.permute.xlu0 0
        %1506 = vperm.xlu0 %1505, %v993
        %v1507 = vpop.permute.xlu0 %1506
        %1508 = vset.pattern.permute.xlu0 0
        %1509 = vperm.xlu0 %1508, %v994
        %v1510 = vpop.permute.xlu0 %1509
        %1511 = vset.pattern.permute.xlu0 0
        %1512 = vperm.xlu0 %1511, %v995
        %v1513 = vpop.permute.xlu0 %1512
        %1514 = vset.pattern.permute.xlu0 0
        %1515 = vperm.xlu0 %1514, %v996
        %v1516 = vpop.permute.xlu0 %1515
        %1517 = vset.pattern.permute.xlu0 0
        %1518 = vperm.xlu0 %1517, %v997
        %v1519 = vpop.permute.xlu0 %1518
        %1520 = vset.pattern.permute.xlu0 0
        %1521 = vperm.xlu0 %1520, %v998
        %v1522 = vpop.permute.xlu0 %1521
        %1523 = vset.pattern.permute.xlu0 0
        %1524 = vperm.xlu0 %1523, %v999
        %v1525 = vpop.permute.xlu0 %1524
        %1526 = vset.pattern.permute.xlu0 0
        %1527 = vperm.xlu0 %1526, %v1000
        %v1528 = vpop.permute.xlu0 %1527
        %1529 = vset.pattern.permute.xlu0 0
        %1530 = vperm.xlu0 %1529, %v1001
        %v1531 = vpop.permute.xlu0 %1530
        %1532 = vset.pattern.permute.xlu0 0
        %1533 = vperm.xlu0 %1532, %v1002
        %v1534 = vpop.permute.xlu0 %1533
        %1535 = vset.pattern.permute.xlu0 0
        %1536 = vperm.xlu0 %1535, %v1003
        %v1537 = vpop.permute.xlu0 %1536
        %1538 = vset.pattern.permute.xlu0 0
        %1539 = vperm.xlu0 %1538, %v1004
        %v1540 = vpop.permute.xlu0 %1539
        %1541 = vset.pattern.permute.xlu0 0
        %1542 = vperm.xlu0 %1541, %v1005
        %v1543 = vpop.permute.xlu0 %1542
        %1544 = vset.pattern.permute.xlu0 0
        %1545 = vperm.xlu0 %1544, %v1006
        %v1546 = vpop.permute.xlu0 %1545
        %1547 = vset.pattern.permute.xlu0 0
        %1548 = vperm.xlu0 %1547, %v1007
        %v1549 = vpop.permute.xlu0 %1548
        %1550 = vset.pattern.permute.xlu0 0
        %1551 = vperm.xlu0 %1550, %v1008
        %v1552 = vpop.permute.xlu0 %1551
        %1553 = vset.pattern.permute.xlu0 0
        %1554 = vperm.xlu0 %1553, %v1009
        %v1555 = vpop.permute.xlu0 %1554
        %1556 = vset.pattern.permute.xlu0 0
        %1557 = vperm.xlu0 %1556, %v1010
        %v1558 = vpop.permute.xlu0 %1557
        %1559 = vset.pattern.permute.xlu0 0
        %1560 = vperm.xlu0 %1559, %v1011
        %v1561 = vpop.permute.xlu0 %1560
        %1562 = vset.pattern.permute.xlu0 0
        %1563 = vperm.xlu0 %1562, %v1012
        %v1564 = vpop.permute.xlu0 %1563
        %1565 = vset.pattern.permute.xlu0 0
        %1566 = vperm.xlu0 %1565, %v1013
        %v1567 = vpop.permute.xlu0 %1566
        %1568 = vset.pattern.permute.xlu0 0
        %1569 = vperm.xlu0 %1568, %v1014
        %v1570 = vpop.permute.xlu0 %1569
        %1571 = vset.pattern.permute.xlu0 0
        %1572 = vperm.xlu0 %1571, %v1015
        %v1573 = vpop.permute.xlu0 %1572
        %1574 = vset.pattern.permute.xlu0 0
        %1575 = vperm.xlu0 %1574, %v1016
        %v1576 = vpop.permute.xlu0 %1575
        %1577 = vset.pattern.permute.xlu0 0
        %1578 = vperm.xlu0 %1577, %v1017
        %v1579 = vpop.permute.xlu0 %1578
        %1580 = vset.pattern.permute.xlu0 0
        %1581 = vperm.xlu0 %1580, %v1018
        %v1582 = vpop.permute.xlu0 %1581
        %1583 = vset.pattern.permute.xlu0 0
        %1584 = vperm.xlu0 %1583, %v1019
        %v1585 = vpop.permute.xlu0 %1584
        %1586 = vset.pattern.permute.xlu0 0
        %1587 = vperm.xlu0 %1586, %v1020
        %v1588 = vpop.permute.xlu0 %1587
        %1589 = vset.pattern.permute.xlu0 0
        %1590 = vperm.xlu0 %1589, %v1021
        %v1591 = vpop.permute.xlu0 %1590
        %1592 = vset.pattern.permute.xlu0 0
        %1593 = vperm.xlu0 %1592, %v1022
        %v1594 = vpop.permute.xlu0 %1593
        %1595 = vset.pattern.permute.xlu0 0
        %1596 = vperm.xlu0 %1595, %v1023
        %v1597 = vpop.permute.xlu0 %1596
        %1598 = vset.pattern.permute.xlu0 0
        %1599 = vperm.xlu0 %1598, %v1024
        %v1600 = vpop.permute.xlu0 %1599
        %1601 = vset.pattern.permute.xlu0 0
        %1602 = vperm.xlu0 %1601, %v1025
        %v1603 = vpop.permute.xlu0 %1602
        %1604 = vset.pattern.permute.xlu0 0
        %1605 = vperm.xlu0 %1604, %v1026
        %v1606 = vpop.permute.xlu0 %1605
        %1607 = vset.pattern.permute.xlu0 0
        %1608 = vperm.xlu0 %1607, %v1027
        %v1609 = vpop.permute.xlu0 %1608
        %1610 = vset.pattern.permute.xlu0 0
        %1611 = vperm.xlu0 %1610, %v1028
        %v1612 = vpop.permute.xlu0 %1611
        %1613 = vset.pattern.permute.xlu0 0
        %1614 = vperm.xlu0 %1613, %v1029
        %v1615 = vpop.permute.xlu0 %1614
        %1616 = vset.pattern.permute.xlu0 0
        %1617 = vperm.xlu0 %1616, %v1030
        %v1618 = vpop.permute.xlu0 %1617
        %1619 = vset.pattern.permute.xlu0 0
        %1620 = vperm.xlu0 %1619, %v1031
        %v1621 = vpop.permute.xlu0 %1620
        %1622 = vset.pattern.permute.xlu0 0
        %1623 = vperm.xlu0 %1622, %v1032
        %v1624 = vpop.permute.xlu0 %1623
        %1625 = vset.pattern.permute.xlu0 0
        %1626 = vperm.xlu0 %1625, %v1033
        %v1627 = vpop.permute.xlu0 %1626
        %1628 = vset.pattern.permute.xlu0 0
        %1629 = vperm.xlu0 %1628, %v1034
        %v1630 = vpop.permute.xlu0 %1629
        %1631 = vset.pattern.permute.xlu0 0
        %1632 = vperm.xlu0 %1631, %v1035
        %v1633 = vpop.permute.xlu0 %1632
        %1634 = vset.pattern.permute.xlu0 0
        %1635 = vperm.xlu0 %1634, %v1036
        %v1636 = vpop.permute.xlu0 %1635
        %1637 = vset.pattern.permute.xlu0 0
        %1638 = vperm.xlu0 %1637, %v1037
        %v1639 = vpop.permute.xlu0 %1638
        %1640 = vset.pattern.permute.xlu0 0
        %1641 = vperm.xlu0 %1640, %v1038
        %v1642 = vpop.permute.xlu0 %1641
        %1643 = vset.pattern.permute.xlu0 0
        %1644 = vperm.xlu0 %1643, %v1039
        %v1645 = vpop.permute.xlu0 %1644
        %1646 = vset.pattern.permute.xlu0 0
        %1647 = vperm.xlu0 %1646, %v1040
        %v1648 = vpop.permute.xlu0 %1647
        %1649 = vset.pattern.permute.xlu0 0
        %1650 = vperm.xlu0 %1649, %v1041
        %v1651 = vpop.permute.xlu0 %1650
        %1652 = vset.pattern.permute.xlu0 0
        %1653 = vperm.xlu0 %1652, %v1042
        %v1654 = vpop.permute.xlu0 %1653
        %1655 = vset.pattern.permute.xlu0 0
        %1656 = vperm.xlu0 %1655, %v1043
        %v1657 = vpop.permute.xlu0 %1656
        %1658 = vset.pattern.permute.xlu0 0
        %1659 = vperm.xlu0 %1658, %v1044
        %v1660 = vpop.permute.xlu0 %1659
        %1661 = vset.pattern.permute.xlu0 0
        %1662 = vperm.xlu0 %1661, %v1045
        %v1663 = vpop.permute.xlu0 %1662
        %1664 = vset.pattern.permute.xlu0 0
        %1665 = vperm.xlu0 %1664, %v1046
        %v1666 = vpop.permute.xlu0 %1665
        %1667 = vset.pattern.permute.xlu0 0
        %1668 = vperm.xlu0 %1667, %v1047
        %v1669 = vpop.permute.xlu0 %1668
        %1670 = vset.pattern.permute.xlu0 0
        %1671 = vperm.xlu0 %1670, %v1048
        %v1672 = vpop.permute.xlu0 %1671
        %1673 = vset.pattern.permute.xlu0 0
        %1674 = vperm.xlu0 %1673, %v1049
        %v1675 = vpop.permute.xlu0 %1674
        %1676 = vset.pattern.permute.xlu0 0
        %1677 = vperm.xlu0 %1676, %v1050
        %v1678 = vpop.permute.xlu0 %1677
        %1679 = vset.pattern.permute.xlu0 0
        %1680 = vperm.xlu0 %1679, %v1051
        %v1681 = vpop.permute.xlu0 %1680
        %1682 = vset.pattern.permute.xlu0 0
        %1683 = vperm.xlu0 %1682, %v1052
        %v1684 = vpop.permute.xlu0 %1683
        %1685 = vset.pattern.permute.xlu0 0
        %1686 = vperm.xlu0 %1685, %v1053
        %v1687 = vpop.permute.xlu0 %1686
        %1688 = vset.pattern.permute.xlu0 0
        %1689 = vperm.xlu0 %1688, %v1054
        %v1690 = vpop.permute.xlu0 %1689
        %1691 = vset.pattern.permute.xlu0 0
        %1692 = vperm.xlu0 %1691, %v1055
        %v1693 = vpop.permute.xlu0 %1692
        %1694 = vset.pattern.permute.xlu0 0
        %1695 = vperm.xlu0 %1694, %v1056
        %v1696 = vpop.permute.xlu0 %1695
        %v1697 = vlaneseq
        %v1698 = vand.u32 %v1697, 127
        %v1699 = vlaneseq
        %v1700 = vshrl.u32 %v1699, 7
        %v1701 = vsub.s32 %v1698, %v1700
        %v1702 = vrot.slane %v1219, %v1701
        %v1703 = vadd.s32 %v1698, 4294967288
        %v1704 = vlaneseq
        %v1705 = vshrl.u32 %v1704, 7
        %v1706 = vsub.s32 %v1703, %v1705
        %v1707 = vrot.slane %v1222, %v1706
        %vm1708 = vcmask 130112
        %v1709 = vsel %vm1708, %v1707, %v1702
        %v1710 = vadd.s32 %v1698, 4294967280
        %v1711 = vlaneseq
        %v1712 = vshrl.u32 %v1711, 7
        %v1713 = vsub.s32 %v1710, %v1712
        %v1714 = vrot.slane %v1225, %v1713
        %vm1715 = vcmask 195712
        %v1716 = vsel %vm1715, %v1714, %v1709
        %v1717 = vadd.s32 %v1698, 4294967272
        %v1718 = vlaneseq
        %v1719 = vshrl.u32 %v1718, 7
        %v1720 = vsub.s32 %v1717, %v1719
        %v1721 = vrot.slane %v1228, %v1720
        %vm1722 = vcmask 261312
        %v1723 = vsel %vm1722, %v1721, %v1716
        %v1724 = vlaneseq
        %v1725 = vshrl.u32 %v1724, 7
        %v1726 = vsub.s32 %v1698, %v1725
        %v1727 = vrot.slane %v1231, %v1726
        %v1728 = vlaneseq
        %v1729 = vshrl.u32 %v1728, 7
        %v1730 = vsub.s32 %v1703, %v1729
        %v1731 = vrot.slane %v1234, %v1730
        %v1732 = vsel %vm1708, %v1731, %v1727
        %v1733 = vlaneseq
        %v1734 = vshrl.u32 %v1733, 7
        %v1735 = vsub.s32 %v1710, %v1734
        %v1736 = vrot.slane %v1237, %v1735
        %v1737 = vsel %vm1715, %v1736, %v1732
        %v1738 = vlaneseq
        %v1739 = vshrl.u32 %v1738, 7
        %v1740 = vsub.s32 %v1717, %v1739
        %v1741 = vrot.slane %v1240, %v1740
        %v1742 = vsel %vm1722, %v1741, %v1737
        %v1743 = vlaneseq
        %v1744 = vshrl.u32 %v1743, 7
        %v1745 = vsub.s32 %v1698, %v1744
        %v1746 = vrot.slane %v1243, %v1745
        %v1747 = vlaneseq
        %v1748 = vshrl.u32 %v1747, 7
        %v1749 = vsub.s32 %v1703, %v1748
        %v1750 = vrot.slane %v1246, %v1749
        %v1751 = vsel %vm1708, %v1750, %v1746
        %v1752 = vlaneseq
        %v1753 = vshrl.u32 %v1752, 7
        %v1754 = vsub.s32 %v1710, %v1753
        %v1755 = vrot.slane %v1249, %v1754
        %v1756 = vsel %vm1715, %v1755, %v1751
        %v1757 = vlaneseq
        %v1758 = vshrl.u32 %v1757, 7
        %v1759 = vsub.s32 %v1717, %v1758
        %v1760 = vrot.slane %v1252, %v1759
        %v1761 = vsel %vm1722, %v1760, %v1756
        %v1762 = vlaneseq
        %v1763 = vshrl.u32 %v1762, 7
        %v1764 = vsub.s32 %v1698, %v1763
        %v1765 = vrot.slane %v1255, %v1764
        %v1766 = vlaneseq
        %v1767 = vshrl.u32 %v1766, 7
        %v1768 = vsub.s32 %v1703, %v1767
        %v1769 = vrot.slane %v1258, %v1768
        %v1770 = vsel %vm1708, %v1769, %v1765
        %v1771 = vlaneseq
        %v1772 = vshrl.u32 %v1771, 7
        %v1773 = vsub.s32 %v1710, %v1772
        %v1774 = vrot.slane %v1261, %v1773
        %v1775 = vsel %vm1715, %v1774, %v1770
        %v1776 = vlaneseq
        %v1777 = vshrl.u32 %v1776, 7
        %v1778 = vsub.s32 %v1717, %v1777
        %v1779 = vrot.slane %v1264, %v1778
        %v1780 = vsel %vm1722, %v1779, %v1775
        %v1781 = vlaneseq
        %v1782 = vshrl.u32 %v1781, 7
        %v1783 = vsub.s32 %v1698, %v1782
        %v1784 = vrot.slane %v1267, %v1783
        %v1785 = vlaneseq
        %v1786 = vshrl.u32 %v1785, 7
        %v1787 = vsub.s32 %v1703, %v1786
        %v1788 = vrot.slane %v1270, %v1787
        %v1789 = vsel %vm1708, %v1788, %v1784
        %v1790 = vlaneseq
        %v1791 = vshrl.u32 %v1790, 7
        %v1792 = vsub.s32 %v1710, %v1791
        %v1793 = vrot.slane %v1273, %v1792
        %v1794 = vsel %vm1715, %v1793, %v1789
        %v1795 = vlaneseq
        %v1796 = vshrl.u32 %v1795, 7
        %v1797 = vsub.s32 %v1717, %v1796
        %v1798 = vrot.slane %v1276, %v1797
        %v1799 = vsel %vm1722, %v1798, %v1794
        %v1800 = vlaneseq
        %v1801 = vshrl.u32 %v1800, 7
        %v1802 = vsub.s32 %v1698, %v1801
        %v1803 = vrot.slane %v1279, %v1802
        %v1804 = vlaneseq
        %v1805 = vshrl.u32 %v1804, 7
        %v1806 = vsub.s32 %v1703, %v1805
        %v1807 = vrot.slane %v1282, %v1806
        %v1808 = vsel %vm1708, %v1807, %v1803
        %v1809 = vlaneseq
        %v1810 = vshrl.u32 %v1809, 7
        %v1811 = vsub.s32 %v1710, %v1810
        %v1812 = vrot.slane %v1285, %v1811
        %v1813 = vsel %vm1715, %v1812, %v1808
        %v1814 = vlaneseq
        %v1815 = vshrl.u32 %v1814, 7
        %v1816 = vsub.s32 %v1717, %v1815
        %v1817 = vrot.slane %v1288, %v1816
        %v1818 = vsel %vm1722, %v1817, %v1813
        %v1819 = vlaneseq
        %v1820 = vshrl.u32 %v1819, 7
        %v1821 = vsub.s32 %v1698, %v1820
        %v1822 = vrot.slane %v1291, %v1821
        %v1823 = vlaneseq
        %v1824 = vshrl.u32 %v1823, 7
        %v1825 = vsub.s32 %v1703, %v1824
        %v1826 = vrot.slane %v1294, %v1825
        %v1827 = vsel %vm1708, %v1826, %v1822
        %v1828 = vlaneseq
        %v1829 = vshrl.u32 %v1828, 7
        %v1830 = vsub.s32 %v1710, %v1829
        %v1831 = vrot.slane %v1297, %v1830
        %v1832 = vsel %vm1715, %v1831, %v1827
        %v1833 = vlaneseq
        %v1834 = vshrl.u32 %v1833, 7
        %v1835 = vsub.s32 %v1717, %v1834
        %v1836 = vrot.slane %v1300, %v1835
        %v1837 = vsel %vm1722, %v1836, %v1832
        %v1838 = vlaneseq
        %v1839 = vshrl.u32 %v1838, 7
        %v1840 = vsub.s32 %v1698, %v1839
        %v1841 = vrot.slane %v1303, %v1840
        %v1842 = vlaneseq
        %v1843 = vshrl.u32 %v1842, 7
        %v1844 = vsub.s32 %v1703, %v1843
        %v1845 = vrot.slane %v1306, %v1844
        %v1846 = vsel %vm1708, %v1845, %v1841
        %v1847 = vlaneseq
        %v1848 = vshrl.u32 %v1847, 7
        %v1849 = vsub.s32 %v1710, %v1848
        %v1850 = vrot.slane %v1309, %v1849
        %v1851 = vsel %vm1715, %v1850, %v1846
        %v1852 = vlaneseq
        %v1853 = vshrl.u32 %v1852, 7
        %v1854 = vsub.s32 %v1717, %v1853
        %v1855 = vrot.slane %v1312, %v1854
        %v1856 = vsel %vm1722, %v1855, %v1851
        %v1857 = vlaneseq
        %v1858 = vshrl.u32 %v1857, 7
        %v1859 = vsub.s32 %v1698, %v1858
        %v1860 = vrot.slane %v1315, %v1859
        %v1861 = vlaneseq
        %v1862 = vshrl.u32 %v1861, 7
        %v1863 = vsub.s32 %v1703, %v1862
        %v1864 = vrot.slane %v1318, %v1863
        %v1865 = vsel %vm1708, %v1864, %v1860
        %v1866 = vlaneseq
        %v1867 = vshrl.u32 %v1866, 7
        %v1868 = vsub.s32 %v1710, %v1867
        %v1869 = vrot.slane %v1321, %v1868
        %v1870 = vsel %vm1715, %v1869, %v1865
        %v1871 = vlaneseq
        %v1872 = vshrl.u32 %v1871, 7
        %v1873 = vsub.s32 %v1717, %v1872
        %v1874 = vrot.slane %v1324, %v1873
        %v1875 = vsel %vm1722, %v1874, %v1870
        %v1876 = vlaneseq
        %v1877 = vshrl.u32 %v1876, 7
        %v1878 = vsub.s32 %v1698, %v1877
        %v1879 = vrot.slane %v1327, %v1878
        %v1880 = vlaneseq
        %v1881 = vshrl.u32 %v1880, 7
        %v1882 = vsub.s32 %v1703, %v1881
        %v1883 = vrot.slane %v1330, %v1882
        %v1884 = vsel %vm1708, %v1883, %v1879
        %v1885 = vlaneseq
        %v1886 = vshrl.u32 %v1885, 7
        %v1887 = vsub.s32 %v1710, %v1886
        %v1888 = vrot.slane %v1333, %v1887
        %v1889 = vsel %vm1715, %v1888, %v1884
        %v1890 = vlaneseq
        %v1891 = vshrl.u32 %v1890, 7
        %v1892 = vsub.s32 %v1717, %v1891
        %v1893 = vrot.slane %v1336, %v1892
        %v1894 = vsel %vm1722, %v1893, %v1889
        %v1895 = vlaneseq
        %v1896 = vshrl.u32 %v1895, 7
        %v1897 = vsub.s32 %v1698, %v1896
        %v1898 = vrot.slane %v1339, %v1897
        %v1899 = vlaneseq
        %v1900 = vshrl.u32 %v1899, 7
        %v1901 = vsub.s32 %v1703, %v1900
        %v1902 = vrot.slane %v1342, %v1901
        %v1903 = vsel %vm1708, %v1902, %v1898
        %v1904 = vlaneseq
        %v1905 = vshrl.u32 %v1904, 7
        %v1906 = vsub.s32 %v1710, %v1905
        %v1907 = vrot.slane %v1345, %v1906
        %v1908 = vsel %vm1715, %v1907, %v1903
        %v1909 = vlaneseq
        %v1910 = vshrl.u32 %v1909, 7
        %v1911 = vsub.s32 %v1717, %v1910
        %v1912 = vrot.slane %v1348, %v1911
        %v1913 = vsel %vm1722, %v1912, %v1908
        %v1914 = vlaneseq
        %v1915 = vshrl.u32 %v1914, 7
        %v1916 = vsub.s32 %v1698, %v1915
        %v1917 = vrot.slane %v1351, %v1916
        %v1918 = vlaneseq
        %v1919 = vshrl.u32 %v1918, 7
        %v1920 = vsub.s32 %v1703, %v1919
        %v1921 = vrot.slane %v1354, %v1920
        %v1922 = vsel %vm1708, %v1921, %v1917
        %v1923 = vlaneseq
        %v1924 = vshrl.u32 %v1923, 7
        %v1925 = vsub.s32 %v1710, %v1924
        %v1926 = vrot.slane %v1357, %v1925
        %v1927 = vsel %vm1715, %v1926, %v1922
        %v1928 = vlaneseq
        %v1929 = vshrl.u32 %v1928, 7
        %v1930 = vsub.s32 %v1717, %v1929
        %v1931 = vrot.slane %v1360, %v1930
        %v1932 = vsel %vm1722, %v1931, %v1927
        %v1933 = vlaneseq
        %v1934 = vshrl.u32 %v1933, 7
        %v1935 = vsub.s32 %v1698, %v1934
        %v1936 = vrot.slane %v1363, %v1935
        %v1937 = vlaneseq
        %v1938 = vshrl.u32 %v1937, 7
        %v1939 = vsub.s32 %v1703, %v1938
        %v1940 = vrot.slane %v1366, %v1939
        %v1941 = vsel %vm1708, %v1940, %v1936
        %v1942 = vlaneseq
        %v1943 = vshrl.u32 %v1942, 7
        %v1944 = vsub.s32 %v1710, %v1943
        %v1945 = vrot.slane %v1369, %v1944
        %v1946 = vsel %vm1715, %v1945, %v1941
        %v1947 = vlaneseq
        %v1948 = vshrl.u32 %v1947, 7
        %v1949 = vsub.s32 %v1717, %v1948
        %v1950 = vrot.slane %v1372, %v1949
        %v1951 = vsel %vm1722, %v1950, %v1946
        %v1952 = vlaneseq
        %v1953 = vshrl.u32 %v1952, 7
        %v1954 = vsub.s32 %v1698, %v1953
        %v1955 = vrot.slane %v1375, %v1954
        %v1956 = vlaneseq
        %v1957 = vshrl.u32 %v1956, 7
        %v1958 = vsub.s32 %v1703, %v1957
        %v1959 = vrot.slane %v1378, %v1958
        %v1960 = vsel %vm1708, %v1959, %v1955
        %v1961 = vlaneseq
        %v1962 = vshrl.u32 %v1961, 7
        %v1963 = vsub.s32 %v1710, %v1962
        %v1964 = vrot.slane %v1381, %v1963
        %v1965 = vsel %vm1715, %v1964, %v1960
        %v1966 = vlaneseq
        %v1967 = vshrl.u32 %v1966, 7
        %v1968 = vsub.s32 %v1717, %v1967
        %v1969 = vrot.slane %v1384, %v1968
        %v1970 = vsel %vm1722, %v1969, %v1965
        %v1971 = vlaneseq
        %v1972 = vshrl.u32 %v1971, 7
        %v1973 = vsub.s32 %v1698, %v1972
        %v1974 = vrot.slane %v1387, %v1973
        %v1975 = vlaneseq
        %v1976 = vshrl.u32 %v1975, 7
        %v1977 = vsub.s32 %v1703, %v1976
        %v1978 = vrot.slane %v1390, %v1977
        %v1979 = vsel %vm1708, %v1978, %v1974
        %v1980 = vlaneseq
        %v1981 = vshrl.u32 %v1980, 7
        %v1982 = vsub.s32 %v1710, %v1981
        %v1983 = vrot.slane %v1393, %v1982
        %v1984 = vsel %vm1715, %v1983, %v1979
        %v1985 = vlaneseq
        %v1986 = vshrl.u32 %v1985, 7
        %v1987 = vsub.s32 %v1717, %v1986
        %v1988 = vrot.slane %v1396, %v1987
        %v1989 = vsel %vm1722, %v1988, %v1984
        %v1990 = vlaneseq
        %v1991 = vshrl.u32 %v1990, 7
        %v1992 = vsub.s32 %v1698, %v1991
        %v1993 = vrot.slane %v1399, %v1992
        %v1994 = vlaneseq
        %v1995 = vshrl.u32 %v1994, 7
        %v1996 = vsub.s32 %v1703, %v1995
        %v1997 = vrot.slane %v1402, %v1996
        %v1998 = vsel %vm1708, %v1997, %v1993
        %v1999 = vlaneseq
        %v2000 = vshrl.u32 %v1999, 7
        %v2001 = vsub.s32 %v1710, %v2000
        %v2002 = vrot.slane %v1405, %v2001
        %v2003 = vsel %vm1715, %v2002, %v1998
        %v2004 = vlaneseq
        %v2005 = vshrl.u32 %v2004, 7
        %v2006 = vsub.s32 %v1717, %v2005
        %v2007 = vrot.slane %v1408, %v2006
        %v2008 = vsel %vm1722, %v2007, %v2003
        %v2009 = vlaneseq
        %v2010 = vshrl.u32 %v2009, 7
        %v2011 = vsub.s32 %v1698, %v2010
        %v2012 = vrot.slane %v1411, %v2011
        %v2013 = vlaneseq
        %v2014 = vshrl.u32 %v2013, 7
        %v2015 = vsub.s32 %v1703, %v2014
        %v2016 = vrot.slane %v1414, %v2015
        %v2017 = vsel %vm1708, %v2016, %v2012
        %v2018 = vlaneseq
        %v2019 = vshrl.u32 %v2018, 7
        %v2020 = vsub.s32 %v1710, %v2019
        %v2021 = vrot.slane %v1417, %v2020
        %v2022 = vsel %vm1715, %v2021, %v2017
        %v2023 = vlaneseq
        %v2024 = vshrl.u32 %v2023, 7
        %v2025 = vsub.s32 %v1717, %v2024
        %v2026 = vrot.slane %v1420, %v2025
        %v2027 = vsel %vm1722, %v2026, %v2022
        %v2028 = vlaneseq
        %v2029 = vshrl.u32 %v2028, 7
        %v2030 = vsub.s32 %v1698, %v2029
        %v2031 = vrot.slane %v1423, %v2030
        %v2032 = vlaneseq
        %v2033 = vshrl.u32 %v2032, 7
        %v2034 = vsub.s32 %v1703, %v2033
        %v2035 = vrot.slane %v1426, %v2034
        %v2036 = vsel %vm1708, %v2035, %v2031
        %v2037 = vlaneseq
        %v2038 = vshrl.u32 %v2037, 7
        %v2039 = vsub.s32 %v1710, %v2038
        %v2040 = vrot.slane %v1429, %v2039
        %v2041 = vsel %vm1715, %v2040, %v2036
        %v2042 = vlaneseq
        %v2043 = vshrl.u32 %v2042, 7
        %v2044 = vsub.s32 %v1717, %v2043
        %v2045 = vrot.slane %v1432, %v2044
        %v2046 = vsel %vm1722, %v2045, %v2041
        %v2047 = vlaneseq
        %v2048 = vshrl.u32 %v2047, 7
        %v2049 = vsub.s32 %v1698, %v2048
        %v2050 = vrot.slane %v1435, %v2049
        %v2051 = vlaneseq
        %v2052 = vshrl.u32 %v2051, 7
        %v2053 = vsub.s32 %v1703, %v2052
        %v2054 = vrot.slane %v1438, %v2053
        %v2055 = vsel %vm1708, %v2054, %v2050
        %v2056 = vlaneseq
        %v2057 = vshrl.u32 %v2056, 7
        %v2058 = vsub.s32 %v1710, %v2057
        %v2059 = vrot.slane %v1441, %v2058
        %v2060 = vsel %vm1715, %v2059, %v2055
        %v2061 = vlaneseq
        %v2062 = vshrl.u32 %v2061, 7
        %v2063 = vsub.s32 %v1717, %v2062
        %v2064 = vrot.slane %v1444, %v2063
        %v2065 = vsel %vm1722, %v2064, %v2060
        %v2066 = vlaneseq
        %v2067 = vshrl.u32 %v2066, 7
        %v2068 = vsub.s32 %v1698, %v2067
        %v2069 = vrot.slane %v1447, %v2068
        %v2070 = vlaneseq
        %v2071 = vshrl.u32 %v2070, 7
        %v2072 = vsub.s32 %v1703, %v2071
        %v2073 = vrot.slane %v1450, %v2072
        %v2074 = vsel %vm1708, %v2073, %v2069
        %v2075 = vlaneseq
        %v2076 = vshrl.u32 %v2075, 7
        %v2077 = vsub.s32 %v1710, %v2076
        %v2078 = vrot.slane %v1453, %v2077
        %v2079 = vsel %vm1715, %v2078, %v2074
        %v2080 = vlaneseq
        %v2081 = vshrl.u32 %v2080, 7
        %v2082 = vsub.s32 %v1717, %v2081
        %v2083 = vrot.slane %v1456, %v2082
        %v2084 = vsel %vm1722, %v2083, %v2079
        %v2085 = vlaneseq
        %v2086 = vshrl.u32 %v2085, 7
        %v2087 = vsub.s32 %v1698, %v2086
        %v2088 = vrot.slane %v1459, %v2087
        %v2089 = vlaneseq
        %v2090 = vshrl.u32 %v2089, 7
        %v2091 = vsub.s32 %v1703, %v2090
        %v2092 = vrot.slane %v1462, %v2091
        %v2093 = vsel %vm1708, %v2092, %v2088
        %v2094 = vlaneseq
        %v2095 = vshrl.u32 %v2094, 7
        %v2096 = vsub.s32 %v1710, %v2095
        %v2097 = vrot.slane %v1465, %v2096
        %v2098 = vsel %vm1715, %v2097, %v2093
        %v2099 = vlaneseq
        %v2100 = vshrl.u32 %v2099, 7
        %v2101 = vsub.s32 %v1717, %v2100
        %v2102 = vrot.slane %v1468, %v2101
        %v2103 = vsel %vm1722, %v2102, %v2098
        %v2104 = vlaneseq
        %v2105 = vshrl.u32 %v2104, 7
        %v2106 = vsub.s32 %v1698, %v2105
        %v2107 = vrot.slane %v1471, %v2106
        %v2108 = vlaneseq
        %v2109 = vshrl.u32 %v2108, 7
        %v2110 = vsub.s32 %v1703, %v2109
        %v2111 = vrot.slane %v1474, %v2110
        %v2112 = vsel %vm1708, %v2111, %v2107
        %v2113 = vlaneseq
        %v2114 = vshrl.u32 %v2113, 7
        %v2115 = vsub.s32 %v1710, %v2114
        %v2116 = vrot.slane %v1477, %v2115
        %v2117 = vsel %vm1715, %v2116, %v2112
        %v2118 = vlaneseq
        %v2119 = vshrl.u32 %v2118, 7
        %v2120 = vsub.s32 %v1717, %v2119
        %v2121 = vrot.slane %v1480, %v2120
        %v2122 = vsel %vm1722, %v2121, %v2117
        %v2123 = vlaneseq
        %v2124 = vshrl.u32 %v2123, 7
        %v2125 = vsub.s32 %v1698, %v2124
        %v2126 = vrot.slane %v1483, %v2125
        %v2127 = vlaneseq
        %v2128 = vshrl.u32 %v2127, 7
        %v2129 = vsub.s32 %v1703, %v2128
        %v2130 = vrot.slane %v1486, %v2129
        %v2131 = vsel %vm1708, %v2130, %v2126
        %v2132 = vlaneseq
        %v2133 = vshrl.u32 %v2132, 7
        %v2134 = vsub.s32 %v1710, %v2133
        %v2135 = vrot.slane %v1489, %v2134
        %v2136 = vsel %vm1715, %v2135, %v2131
        %v2137 = vlaneseq
        %v2138 = vshrl.u32 %v2137, 7
        %v2139 = vsub.s32 %v1717, %v2138
        %v2140 = vrot.slane %v1492, %v2139
        %v2141 = vsel %vm1722, %v2140, %v2136
        %v2142 = vlaneseq
        %v2143 = vshrl.u32 %v2142, 7
        %v2144 = vsub.s32 %v1698, %v2143
        %v2145 = vrot.slane %v1495, %v2144
        %v2146 = vlaneseq
        %v2147 = vshrl.u32 %v2146, 7
        %v2148 = vsub.s32 %v1703, %v2147
        %v2149 = vrot.slane %v1498, %v2148
        %v2150 = vsel %vm1708, %v2149, %v2145
        %v2151 = vlaneseq
        %v2152 = vshrl.u32 %v2151, 7
        %v2153 = vsub.s32 %v1710, %v2152
        %v2154 = vrot.slane %v1501, %v2153
        %v2155 = vsel %vm1715, %v2154, %v2150
        %v2156 = vlaneseq
        %v2157 = vshrl.u32 %v2156, 7
        %v2158 = vsub.s32 %v1717, %v2157
        %v2159 = vrot.slane %v1504, %v2158
        %v2160 = vsel %vm1722, %v2159, %v2155
        %v2161 = vlaneseq
        %v2162 = vshrl.u32 %v2161, 7
        %v2163 = vsub.s32 %v1698, %v2162
        %v2164 = vrot.slane %v1507, %v2163
        %v2165 = vlaneseq
        %v2166 = vshrl.u32 %v2165, 7
        %v2167 = vsub.s32 %v1703, %v2166
        %v2168 = vrot.slane %v1510, %v2167
        %v2169 = vsel %vm1708, %v2168, %v2164
        %v2170 = vlaneseq
        %v2171 = vshrl.u32 %v2170, 7
        %v2172 = vsub.s32 %v1710, %v2171
        %v2173 = vrot.slane %v1513, %v2172
        %v2174 = vsel %vm1715, %v2173, %v2169
        %v2175 = vlaneseq
        %v2176 = vshrl.u32 %v2175, 7
        %v2177 = vsub.s32 %v1717, %v2176
        %v2178 = vrot.slane %v1516, %v2177
        %v2179 = vsel %vm1722, %v2178, %v2174
        %v2180 = vlaneseq
        %v2181 = vshrl.u32 %v2180, 7
        %v2182 = vsub.s32 %v1698, %v2181
        %v2183 = vrot.slane %v1519, %v2182
        %v2184 = vlaneseq
        %v2185 = vshrl.u32 %v2184, 7
        %v2186 = vsub.s32 %v1703, %v2185
        %v2187 = vrot.slane %v1522, %v2186
        %v2188 = vsel %vm1708, %v2187, %v2183
        %v2189 = vlaneseq
        %v2190 = vshrl.u32 %v2189, 7
        %v2191 = vsub.s32 %v1710, %v2190
        %v2192 = vrot.slane %v1525, %v2191
        %v2193 = vsel %vm1715, %v2192, %v2188
        %v2194 = vlaneseq
        %v2195 = vshrl.u32 %v2194, 7
        %v2196 = vsub.s32 %v1717, %v2195
        %v2197 = vrot.slane %v1528, %v2196
        %v2198 = vsel %vm1722, %v2197, %v2193
        %v2199 = vlaneseq
        %v2200 = vshrl.u32 %v2199, 7
        %v2201 = vsub.s32 %v1698, %v2200
        %v2202 = vrot.slane %v1531, %v2201
        %v2203 = vlaneseq
        %v2204 = vshrl.u32 %v2203, 7
        %v2205 = vsub.s32 %v1703, %v2204
        %v2206 = vrot.slane %v1534, %v2205
        %v2207 = vsel %vm1708, %v2206, %v2202
        %v2208 = vlaneseq
        %v2209 = vshrl.u32 %v2208, 7
        %v2210 = vsub.s32 %v1710, %v2209
        %v2211 = vrot.slane %v1537, %v2210
        %v2212 = vsel %vm1715, %v2211, %v2207
        %v2213 = vlaneseq
        %v2214 = vshrl.u32 %v2213, 7
        %v2215 = vsub.s32 %v1717, %v2214
        %v2216 = vrot.slane %v1540, %v2215
        %v2217 = vsel %vm1722, %v2216, %v2212
        %v2218 = vlaneseq
        %v2219 = vshrl.u32 %v2218, 7
        %v2220 = vsub.s32 %v1698, %v2219
        %v2221 = vrot.slane %v1543, %v2220
        %v2222 = vlaneseq
        %v2223 = vshrl.u32 %v2222, 7
        %v2224 = vsub.s32 %v1703, %v2223
        %v2225 = vrot.slane %v1546, %v2224
        %v2226 = vsel %vm1708, %v2225, %v2221
        %v2227 = vlaneseq
        %v2228 = vshrl.u32 %v2227, 7
        %v2229 = vsub.s32 %v1710, %v2228
        %v2230 = vrot.slane %v1549, %v2229
        %v2231 = vsel %vm1715, %v2230, %v2226
        %v2232 = vlaneseq
        %v2233 = vshrl.u32 %v2232, 7
        %v2234 = vsub.s32 %v1717, %v2233
        %v2235 = vrot.slane %v1552, %v2234
        %v2236 = vsel %vm1722, %v2235, %v2231
        %v2237 = vlaneseq
        %v2238 = vshrl.u32 %v2237, 7
        %v2239 = vsub.s32 %v1698, %v2238
        %v2240 = vrot.slane %v1555, %v2239
        %v2241 = vlaneseq
        %v2242 = vshrl.u32 %v2241, 7
        %v2243 = vsub.s32 %v1703, %v2242
        %v2244 = vrot.slane %v1558, %v2243
        %v2245 = vsel %vm1708, %v2244, %v2240
        %v2246 = vlaneseq
        %v2247 = vshrl.u32 %v2246, 7
        %v2248 = vsub.s32 %v1710, %v2247
        %v2249 = vrot.slane %v1561, %v2248
        %v2250 = vsel %vm1715, %v2249, %v2245
        %v2251 = vlaneseq
        %v2252 = vshrl.u32 %v2251, 7
        %v2253 = vsub.s32 %v1717, %v2252
        %v2254 = vrot.slane %v1564, %v2253
        %v2255 = vsel %vm1722, %v2254, %v2250
        %v2256 = vlaneseq
        %v2257 = vshrl.u32 %v2256, 7
        %v2258 = vsub.s32 %v1698, %v2257
        %v2259 = vrot.slane %v1567, %v2258
        %v2260 = vlaneseq
        %v2261 = vshrl.u32 %v2260, 7
        %v2262 = vsub.s32 %v1703, %v2261
        %v2263 = vrot.slane %v1570, %v2262
        %v2264 = vsel %vm1708, %v2263, %v2259
        %v2265 = vlaneseq
        %v2266 = vshrl.u32 %v2265, 7
        %v2267 = vsub.s32 %v1710, %v2266
        %v2268 = vrot.slane %v1573, %v2267
        %v2269 = vsel %vm1715, %v2268, %v2264
        %v2270 = vlaneseq
        %v2271 = vshrl.u32 %v2270, 7
        %v2272 = vsub.s32 %v1717, %v2271
        %v2273 = vrot.slane %v1576, %v2272
        %v2274 = vsel %vm1722, %v2273, %v2269
        %v2275 = vlaneseq
        %v2276 = vshrl.u32 %v2275, 7
        %v2277 = vsub.s32 %v1698, %v2276
        %v2278 = vrot.slane %v1579, %v2277
        %v2279 = vlaneseq
        %v2280 = vshrl.u32 %v2279, 7
        %v2281 = vsub.s32 %v1703, %v2280
        %v2282 = vrot.slane %v1582, %v2281
        %v2283 = vsel %vm1708, %v2282, %v2278
        %v2284 = vlaneseq
        %v2285 = vshrl.u32 %v2284, 7
        %v2286 = vsub.s32 %v1710, %v2285
        %v2287 = vrot.slane %v1585, %v2286
        %v2288 = vsel %vm1715, %v2287, %v2283
        %v2289 = vlaneseq
        %v2290 = vshrl.u32 %v2289, 7
        %v2291 = vsub.s32 %v1717, %v2290
        %v2292 = vrot.slane %v1588, %v2291
        %v2293 = vsel %vm1722, %v2292, %v2288
        %v2294 = vlaneseq
        %v2295 = vshrl.u32 %v2294, 7
        %v2296 = vsub.s32 %v1698, %v2295
        %v2297 = vrot.slane %v1591, %v2296
        %v2298 = vlaneseq
        %v2299 = vshrl.u32 %v2298, 7
        %v2300 = vsub.s32 %v1703, %v2299
        %v2301 = vrot.slane %v1594, %v2300
        %v2302 = vsel %vm1708, %v2301, %v2297
        %v2303 = vlaneseq
        %v2304 = vshrl.u32 %v2303, 7
        %v2305 = vsub.s32 %v1710, %v2304
        %v2306 = vrot.slane %v1597, %v2305
        %v2307 = vsel %vm1715, %v2306, %v2302
        %v2308 = vlaneseq
        %v2309 = vshrl.u32 %v2308, 7
        %v2310 = vsub.s32 %v1717, %v2309
        %v2311 = vrot.slane %v1600, %v2310
        %v2312 = vsel %vm1722, %v2311, %v2307
        %v2313 = vlaneseq
        %v2314 = vshrl.u32 %v2313, 7
        %v2315 = vsub.s32 %v1698, %v2314
        %v2316 = vrot.slane %v1603, %v2315
        %v2317 = vlaneseq
        %v2318 = vshrl.u32 %v2317, 7
        %v2319 = vsub.s32 %v1703, %v2318
        %v2320 = vrot.slane %v1606, %v2319
        %v2321 = vsel %vm1708, %v2320, %v2316
        %v2322 = vlaneseq
        %v2323 = vshrl.u32 %v2322, 7
        %v2324 = vsub.s32 %v1710, %v2323
        %v2325 = vrot.slane %v1609, %v2324
        %v2326 = vsel %vm1715, %v2325, %v2321
        %v2327 = vlaneseq
        %v2328 = vshrl.u32 %v2327, 7
        %v2329 = vsub.s32 %v1717, %v2328
        %v2330 = vrot.slane %v1612, %v2329
        %v2331 = vsel %vm1722, %v2330, %v2326
        %v2332 = vlaneseq
        %v2333 = vshrl.u32 %v2332, 7
        %v2334 = vsub.s32 %v1698, %v2333
        %v2335 = vrot.slane %v1615, %v2334
        %v2336 = vlaneseq
        %v2337 = vshrl.u32 %v2336, 7
        %v2338 = vsub.s32 %v1703, %v2337
        %v2339 = vrot.slane %v1618, %v2338
        %v2340 = vsel %vm1708, %v2339, %v2335
        %v2341 = vlaneseq
        %v2342 = vshrl.u32 %v2341, 7
        %v2343 = vsub.s32 %v1710, %v2342
        %v2344 = vrot.slane %v1621, %v2343
        %v2345 = vsel %vm1715, %v2344, %v2340
        %v2346 = vlaneseq
        %v2347 = vshrl.u32 %v2346, 7
        %v2348 = vsub.s32 %v1717, %v2347
        %v2349 = vrot.slane %v1624, %v2348
        %v2350 = vsel %vm1722, %v2349, %v2345
        %v2351 = vlaneseq
        %v2352 = vshrl.u32 %v2351, 7
        %v2353 = vsub.s32 %v1698, %v2352
        %v2354 = vrot.slane %v1627, %v2353
        %v2355 = vlaneseq
        %v2356 = vshrl.u32 %v2355, 7
        %v2357 = vsub.s32 %v1703, %v2356
        %v2358 = vrot.slane %v1630, %v2357
        %v2359 = vsel %vm1708, %v2358, %v2354
        %v2360 = vlaneseq
        %v2361 = vshrl.u32 %v2360, 7
        %v2362 = vsub.s32 %v1710, %v2361
        %v2363 = vrot.slane %v1633, %v2362
        %v2364 = vsel %vm1715, %v2363, %v2359
        %v2365 = vlaneseq
        %v2366 = vshrl.u32 %v2365, 7
        %v2367 = vsub.s32 %v1717, %v2366
        %v2368 = vrot.slane %v1636, %v2367
        %v2369 = vsel %vm1722, %v2368, %v2364
        %v2370 = vlaneseq
        %v2371 = vshrl.u32 %v2370, 7
        %v2372 = vsub.s32 %v1698, %v2371
        %v2373 = vrot.slane %v1639, %v2372
        %v2374 = vlaneseq
        %v2375 = vshrl.u32 %v2374, 7
        %v2376 = vsub.s32 %v1703, %v2375
        %v2377 = vrot.slane %v1642, %v2376
        %v2378 = vsel %vm1708, %v2377, %v2373
        %v2379 = vlaneseq
        %v2380 = vshrl.u32 %v2379, 7
        %v2381 = vsub.s32 %v1710, %v2380
        %v2382 = vrot.slane %v1645, %v2381
        %v2383 = vsel %vm1715, %v2382, %v2378
        %v2384 = vlaneseq
        %v2385 = vshrl.u32 %v2384, 7
        %v2386 = vsub.s32 %v1717, %v2385
        %v2387 = vrot.slane %v1648, %v2386
        %v2388 = vsel %vm1722, %v2387, %v2383
        %v2389 = vlaneseq
        %v2390 = vshrl.u32 %v2389, 7
        %v2391 = vsub.s32 %v1698, %v2390
        %v2392 = vrot.slane %v1651, %v2391
        %v2393 = vlaneseq
        %v2394 = vshrl.u32 %v2393, 7
        %v2395 = vsub.s32 %v1703, %v2394
        %v2396 = vrot.slane %v1654, %v2395
        %v2397 = vsel %vm1708, %v2396, %v2392
        %v2398 = vlaneseq
        %v2399 = vshrl.u32 %v2398, 7
        %v2400 = vsub.s32 %v1710, %v2399
        %v2401 = vrot.slane %v1657, %v2400
        %v2402 = vsel %vm1715, %v2401, %v2397
        %v2403 = vlaneseq
        %v2404 = vshrl.u32 %v2403, 7
        %v2405 = vsub.s32 %v1717, %v2404
        %v2406 = vrot.slane %v1660, %v2405
        %v2407 = vsel %vm1722, %v2406, %v2402
        %v2408 = vlaneseq
        %v2409 = vshrl.u32 %v2408, 7
        %v2410 = vsub.s32 %v1698, %v2409
        %v2411 = vrot.slane %v1663, %v2410
        %v2412 = vlaneseq
        %v2413 = vshrl.u32 %v2412, 7
        %v2414 = vsub.s32 %v1703, %v2413
        %v2415 = vrot.slane %v1666, %v2414
        %v2416 = vsel %vm1708, %v2415, %v2411
        %v2417 = vlaneseq
        %v2418 = vshrl.u32 %v2417, 7
        %v2419 = vsub.s32 %v1710, %v2418
        %v2420 = vrot.slane %v1669, %v2419
        %v2421 = vsel %vm1715, %v2420, %v2416
        %v2422 = vlaneseq
        %v2423 = vshrl.u32 %v2422, 7
        %v2424 = vsub.s32 %v1717, %v2423
        %v2425 = vrot.slane %v1672, %v2424
        %v2426 = vsel %vm1722, %v2425, %v2421
        %v2427 = vlaneseq
        %v2428 = vshrl.u32 %v2427, 7
        %v2429 = vsub.s32 %v1698, %v2428
        %v2430 = vrot.slane %v1675, %v2429
        %v2431 = vlaneseq
        %v2432 = vshrl.u32 %v2431, 7
        %v2433 = vsub.s32 %v1703, %v2432
        %v2434 = vrot.slane %v1678, %v2433
        %v2435 = vsel %vm1708, %v2434, %v2430
        %v2436 = vlaneseq
        %v2437 = vshrl.u32 %v2436, 7
        %v2438 = vsub.s32 %v1710, %v2437
        %v2439 = vrot.slane %v1681, %v2438
        %v2440 = vsel %vm1715, %v2439, %v2435
        %v2441 = vlaneseq
        %v2442 = vshrl.u32 %v2441, 7
        %v2443 = vsub.s32 %v1717, %v2442
        %v2444 = vrot.slane %v1684, %v2443
        %v2445 = vsel %vm1722, %v2444, %v2440
        %v2446 = vlaneseq
        %v2447 = vshrl.u32 %v2446, 7
        %v2448 = vsub.s32 %v1698, %v2447
        %v2449 = vrot.slane %v1687, %v2448
        %v2450 = vlaneseq
        %v2451 = vshrl.u32 %v2450, 7
        %v2452 = vsub.s32 %v1703, %v2451
        %v2453 = vrot.slane %v1690, %v2452
        %v2454 = vsel %vm1708, %v2453, %v2449
        %v2455 = vlaneseq
        %v2456 = vshrl.u32 %v2455, 7
        %v2457 = vsub.s32 %v1710, %v2456
        %v2458 = vrot.slane %v1693, %v2457
        %v2459 = vsel %vm1715, %v2458, %v2454
        %v2460 = vlaneseq
        %v2461 = vshrl.u32 %v2460, 7
        %v2462 = vsub.s32 %v1717, %v2461
        %v2463 = vrot.slane %v1696, %v2462
        %v2464 = vsel %vm1722, %v2463, %v2459
        %vm2465 = vcmask 1041409
        %v2466 = vsel %vm2465, %v1742, %v1723
        %vm2467 = vcmask 1042434
        %v2468 = vsel %vm2467, %v1761, %v2466
        %vm2469 = vcmask 1043459
        %v2470 = vsel %vm2469, %v1780, %v2468
        %vm2471 = vcmask 1044484
        %v2472 = vsel %vm2471, %v1799, %v2470
        %v2473 = vsel %vm2465, %v1837, %v1818
        %v2474 = vsel %vm2467, %v1856, %v2473
        %v2475 = vsel %vm2469, %v1875, %v2474
        %v2476 = vsel %vm2471, %v1894, %v2475
        %v2477 = vsel %vm2465, %v1932, %v1913
        %v2478 = vsel %vm2467, %v1951, %v2477
        %v2479 = vsel %vm2469, %v1970, %v2478
        %v2480 = vsel %vm2471, %v1989, %v2479
        %v2481 = vsel %vm2465, %v2027, %v2008
        %v2482 = vsel %vm2467, %v2046, %v2481
        %v2483 = vsel %vm2469, %v2065, %v2482
        %v2484 = vsel %vm2471, %v2084, %v2483
        %v2485 = vsel %vm2465, %v2122, %v2103
        %v2486 = vsel %vm2467, %v2141, %v2485
        %v2487 = vsel %vm2469, %v2160, %v2486
        %v2488 = vsel %vm2471, %v2179, %v2487
        %v2489 = vsel %vm2465, %v2217, %v2198
        %v2490 = vsel %vm2467, %v2236, %v2489
        %v2491 = vsel %vm2469, %v2255, %v2490
        %v2492 = vsel %vm2471, %v2274, %v2491
        %v2493 = vsel %vm2465, %v2312, %v2293
        %v2494 = vsel %vm2467, %v2331, %v2493
        %v2495 = vsel %vm2469, %v2350, %v2494
        %v2496 = vsel %vm2471, %v2369, %v2495
        %v2497 = vsel %vm2465, %v2407, %v2388
        %v2498 = vsel %vm2467, %v2426, %v2497
        %v2499 = vsel %vm2469, %v2445, %v2498
        %v2500 = vsel %vm2471, %v2464, %v2499
        %vm2509 = vcmask 241664
        %v2510 = vsel %vm2509, %v2472, 0.0
        %2511 = vadd.xlane.f32.xlu0 %v2510
        %v2512 = vpop.xlane.xlu0 %2511
        %v2513 = vsel %vm2509, %v2476, 0.0
        %2514 = vadd.xlane.f32.xlu0 %v2513
        %v2515 = vpop.xlane.xlu0 %2514
        %v2516 = vsel %vm2509, %v2480, 0.0
        %2517 = vadd.xlane.f32.xlu0 %v2516
        %v2518 = vpop.xlane.xlu0 %2517
        %v2519 = vsel %vm2509, %v2484, 0.0
        %2520 = vadd.xlane.f32.xlu0 %v2519
        %v2521 = vpop.xlane.xlu0 %2520
        %v2522 = vsel %vm2509, %v2488, 0.0
        %2523 = vadd.xlane.f32.xlu0 %v2522
        %v2524 = vpop.xlane.xlu0 %2523
        %v2525 = vsel %vm2509, %v2492, 0.0
        %2526 = vadd.xlane.f32.xlu0 %v2525
        %v2527 = vpop.xlane.xlu0 %2526
        %v2528 = vsel %vm2509, %v2496, 0.0
        %2529 = vadd.xlane.f32.xlu0 %v2528
        %v2530 = vpop.xlane.xlu0 %2529
        %v2531 = vsel %vm2509, %v2500, 0.0
        %2532 = vadd.xlane.f32.xlu0 %v2531
        %v2533 = vpop.xlane.xlu0 %2532
        %v2534 = vlaneseq
        %v2535 = vshrl.u32 %v2534, 7
        %v2536 = vsub.s32 5, %v2535
        %v2537 = vrot.slane %v780, %v2536
        %2540 = vbcast.lane.b32.xlu0 %v2537, 256
        %v2541 = vpop.permute.xlu0 %2540
        %v2543 = vadd.f32 %v2512, %v2541
        %v2544 = vadd.f32 %v2515, %v2541
        %v2545 = vadd.f32 %v2518, %v2541
        %v2546 = vadd.f32 %v2521, %v2541
        %v2547 = vadd.f32 %v2524, %v2541
        %v2548 = vadd.f32 %v2527, %v2541
        %v2549 = vadd.f32 %v2530, %v2541
        %v2550 = vadd.f32 %v2533, %v2541
        %v2551 = vtanh.pop %v2543
        %v2552 = vtanh.pop %v2544
        %v2553 = vtanh.pop %v2545
        %v2554 = vtanh.pop %v2546
        %v2555 = vtanh.pop %v2547
        %v2556 = vtanh.pop %v2548
        %v2557 = vtanh.pop %v2549
        %v2558 = vtanh.pop %v2550
        %v2559 = vlaneseq
        %v2560 = vshrl.u32 %v2559, 7
        %v2561 = vsub.s32 6, %v2560
        %v2562 = vrot.slane %v780, %v2561
        %2565 = vbcast.lane.b32.xlu0 %v2562, 256
        %v2566 = vpop.permute.xlu0 %2565
        %v2568 = vmul.f32 %v2551, %v2566
        %v2569 = vmul.f32 %v2552, %v2566
        %v2570 = vmul.f32 %v2553, %v2566
        %v2571 = vmul.f32 %v2554, %v2566
        %v2572 = vmul.f32 %v2555, %v2566
        %v2573 = vmul.f32 %v2556, %v2566
        %v2574 = vmul.f32 %v2557, %v2566
        %v2575 = vmul.f32 %v2558, %v2566
        %2584 = vset.pattern.permute.xlu0 0
        %2585 = vperm.xlu0 %2584, %v2568
        %v2586 = vpop.permute.xlu0 %2585
        %2587 = vset.pattern.permute.xlu0 0
        %2588 = vperm.xlu0 %2587, %v2569
        %v2589 = vpop.permute.xlu0 %2588
        %2590 = vset.pattern.permute.xlu0 0
        %2591 = vperm.xlu0 %2590, %v2570
        %v2592 = vpop.permute.xlu0 %2591
        %2593 = vset.pattern.permute.xlu0 0
        %2594 = vperm.xlu0 %2593, %v2571
        %v2595 = vpop.permute.xlu0 %2594
        %2596 = vset.pattern.permute.xlu0 0
        %2597 = vperm.xlu0 %2596, %v2572
        %v2598 = vpop.permute.xlu0 %2597
        %2599 = vset.pattern.permute.xlu0 0
        %2600 = vperm.xlu0 %2599, %v2573
        %v2601 = vpop.permute.xlu0 %2600
        %2602 = vset.pattern.permute.xlu0 0
        %2603 = vperm.xlu0 %2602, %v2574
        %v2604 = vpop.permute.xlu0 %2603
        %2605 = vset.pattern.permute.xlu0 0
        %2606 = vperm.xlu0 %2605, %v2575
        %v2607 = vpop.permute.xlu0 %2606
        %v2608 = vlaneseq
        %v2609 = vshrl.u32 %v2608, 7
        %v2610 = vsub.s32 %v1698, %v2609
        %v2611 = vrot.slane %v2586, %v2610
        %v2612 = vlaneseq
        %v2613 = vshrl.u32 %v2612, 7
        %v2614 = vsub.s32 %v1698, %v2613
        %v2615 = vrot.slane %v2589, %v2614
        %v2616 = vlaneseq
        %v2617 = vshrl.u32 %v2616, 7
        %v2618 = vsub.s32 %v1698, %v2617
        %v2619 = vrot.slane %v2592, %v2618
        %v2620 = vlaneseq
        %v2621 = vshrl.u32 %v2620, 7
        %v2622 = vsub.s32 %v1698, %v2621
        %v2623 = vrot.slane %v2595, %v2622
        %v2624 = vlaneseq
        %v2625 = vshrl.u32 %v2624, 7
        %v2626 = vsub.s32 %v1698, %v2625
        %v2627 = vrot.slane %v2598, %v2626
        %v2628 = vlaneseq
        %v2629 = vshrl.u32 %v2628, 7
        %v2630 = vsub.s32 %v1698, %v2629
        %v2631 = vrot.slane %v2601, %v2630
        %v2632 = vlaneseq
        %v2633 = vshrl.u32 %v2632, 7
        %v2634 = vsub.s32 %v1698, %v2633
        %v2635 = vrot.slane %v2604, %v2634
        %v2636 = vlaneseq
        %v2637 = vshrl.u32 %v2636, 7
        %v2638 = vsub.s32 %v1698, %v2637
        %v2639 = vrot.slane %v2607, %v2638
        %v2640 = vsel %vm2465, %v2615, %v2611
        %v2641 = vsel %vm2467, %v2619, %v2640
        %v2642 = vsel %vm2469, %v2623, %v2641
        %v2643 = vsel %vm2471, %v2627, %v2642
        %vm2644 = vcmask 1045509
        %v2645 = vsel %vm2644, %v2631, %v2643
        %vm2646 = vcmask 1046534
        %v2647 = vsel %vm2646, %v2635, %v2645
        %vm2648 = vcmask 1047559
        %v2649 = vsel %vm2648, %v2639, %v2647
        %vm2651 = vcmask 39936
        %v2652 = vsel %vm2651, %v2649, 0.0
        %2653 = vadd.xlane.f32.xlu0 %v2652
        %v2654 = vpop.xlane.xlu0 %2653
        %s2655 = sld [smem:[#allocation3]]
        %v2656 = vstv %s2655
        %v2657 = vadd.f32 %v2654, %v2656
        %v2658 = vtanh.pop %v2657
        %v2659 = vld [vmem:[%s5] sm:$0x1]
        %v2661 = vlaneseq
        %v2662 = vshrl.u32 %v2661, 7
        %v2663 = vsub.s32 0, %v2662
        %v2664 = vrot.slane %v2659, %v2663
        %v2666 = vmul.f32 %v282, %v2664
        %v2667 = vsel %vm287, %v2666, 0.0
        %2668 = vadd.xlane.f32.xlu0 %v2667
        %v2669 = vpop.xlane.xlu0 %2668
        %s2670 = sld [smem:[#allocation3 + $0x1]]
        %v2671 = vstv %s2670
        %v2672 = vadd.f32 %v2669, %v2671
        %v2673 = vrot.slane %v2672, 4
        %v2674 = vmax.f32 %v2672, %v2673
        %v2675 = vrot.slane %v2674, 2
        %v2676 = vmax.f32 %v2674, %v2675
        %v2677 = vrot.slane %v2676, 1
        %v2678 = vmax.f32 %v2676, %v2677
        %v2679 = vsub.f32 %v2672, %v2678
        %v2680 = vmul.f32 %v2679, 1.442695
        %v2681 = vpow.pop %v2680
        %v2682 = vmul.f32 %v2681, %v285
        %vm2683 = vcmask 7168
        %v2684 = vsel %vm2683, %v2682, 0.0
        %v2685 = vrot.slane %v2684, 4
        %v2686 = vadd.f32 %v2684, %v2685
        %v2687 = vrot.slane %v2686, 2
        %v2688 = vadd.f32 %v2686, %v2687
        %v2689 = vrot.slane %v2688, 1
        %v2690 = vadd.f32 %v2688, %v2689
        %v2691 = vsub.f32 0.0, %v2678
        %v2692 = vmul.f32 %v2691, 1.442695
        %v2693 = vpow.pop %v2692
        %v2694 = vmul.f32 %v2693, 1e-05
        %v2695 = vadd.f32 %v2690, %v2694
        %v2696 = vrcp.pop %v2695
        %v2697 = vmul.f32 %v2682, %v2696
        %v2698 = vmul.f32 %v2658, %v2697
        %v2699 = vsel %vm2683, %v2698, 0.0
        %v2700 = vrot.slane %v2699, 4
        %v2701 = vadd.f32 %v2699, %v2700
        %v2702 = vrot.slane %v2701, 2
        %v2703 = vadd.f32 %v2701, %v2702
        %v2704 = vrot.slane %v2703, 1
        %v2705 = vadd.f32 %v2703, %v2704
        %vm2706 = vcmask 0
        %2707 = vst.msk [vmem:[%s281] sm:$0x1] %vm2706, %v2705
        %p2708 = scmp.lt.s32.totalorder %s26, 1
        %s2709 = scalar_select %p2708, %s26, 1
        %s2710 = scalar_lea.vmem %s6, %s2709
        // Predicated region
        $region45: #{tpu_custom_call.1} parent=39 // pred_check
          %p2711 = pneg %p164
        $region46: #{tpu_custom_call.1} parent=39 // pred_check_branch
          %2713 = sbr.rel (%p2711) target = $region48
        $region47: #{tpu_custom_call.1} parent=39 // pred_region
          _
        $region48: #{tpu_custom_call.1} parent=39 // pred_fallthru
          _
      $region40: #{tpu_custom_call.1} parent=5 // pred_fallthru
        _
      %p2714 = scmp.le.s32.totalorder 2, %s21
      // Predicated region
      $region49: #{tpu_custom_call.1} parent=5 // pred_check
        %p2715 = pneg %p2714
      $region50: #{tpu_custom_call.1} parent=5 // pred_check_branch
        %2717 = sbr.rel (%p2715) target = $region52
      $region51: #{tpu_custom_call.1} parent=5 // pred_region
        %s2718 = ssub.s32 %s21, 2
        // Predicated region
        $region53: #{tpu_custom_call.1} parent=51 // pred_check
          %p2719 = pneg %p170
        $region54: #{tpu_custom_call.1} parent=51 // pred_check_branch
          %2721 = sbr.rel (%p2719) target = $region56
        $region55: #{tpu_custom_call.1} parent=51 // pred_region
          %p2722 = scmp.lt.s32.totalorder %s27, 1
          %s2723 = scalar_select %p2722, %s27, 1
          %s2724 = scalar_lea.vmem %s6, %s2723
        $region56: #{tpu_custom_call.1} parent=51 // pred_fallthru
          _
      $region52: #{tpu_custom_call.1} parent=5 // pred_fallthru
        _
    $region6: #{tpu_custom_call.1} parent=1 // loop_footer
      %s25 = sadd.s32 1, %s21
    $region7: #{tpu_custom_call.1} parent=1 // loop_footer_branch
      %20 = sbr.rel target = $region3
    $region8: #{tpu_custom_call.1} parent=1 // loop_exit
      _
    %2725 = vsyncpa [#allocation5], 1
    %s2726 = scalar_lea.sflag [#allocation5], 1
    %2727 = vsyncpa %s2726, 1

</llo_original>
